<compile_context>
chip_gen: v6e
topology: v6e:2x2x1
jax: 0.10.0
libtpu: 0.0.40
codegen_flags: <defaults>
</compile_context>

<pallas_src>
import functools

import jax
import jax.numpy as jnp
from jax.experimental import pallas as pl
from jax.experimental.pallas import tpu as pltpu

DIM = 64  # hidden width, matches the PyTorch module


# ----------------------------- kernel helpers -------------------------------
def _softmax_lastdim(v):
    m = jnp.max(v, axis=-1, keepdims=True)
    e = jnp.exp(v - m)
    return e * pl.reciprocal(jnp.sum(e, axis=-1, keepdims=True), approx=True)


def _softplus(v):
    # numerically stable softplus, matches F.softplus semantics (f32)
    return jnp.maximum(v, 0.0) + jnp.log1p(jnp.exp(-jnp.abs(v)))


def _full_spec(shape):
    nd = len(shape)
    return pl.BlockSpec(shape, lambda i, _nd=nd: (0,) * _nd)


def _round_up(n, m):
    return -(-n // m) * m


# ------------------------------ fused kernel ---------------------------------
# q(y|x):  Linear(T*Xd,64) -> LeakyReLU(0.2) -> Linear(64,64) -> LeakyReLU(0.2)
#          -> logits Linear(64,C) -> softmax prob -> Gumbel-Softmax sample (soft, temperature)
# glue:    time-broadcast of the categorical sample + implicit concat with x
#          (done as  x_rows @ wz1x  +  broadcast_T(cat @ wz1c) , no concat materialized)
# q(z|x,y):ReLU -> Linear(64,Xd) -> ReLU -> fused Gaussian head [mu|var] -> softplus var
#          -> z = mu + eps*sqrt(var+1e-10)
# p(z|y):  fused head [y_mean|y_var] applied to z (GMVAENet calls generative(z, y)), softplus var.
def gmvae_fused_kernel(xf_ref, xr_ref, gu_ref, eps_ref,
                       w1_ref, b1_ref, w2_ref, b2_ref, wl_ref, bl_ref,
                       wz1x_ref, wz1c_ref, bz1_ref, wz2_ref, bz2_ref,
                       wmv_ref, bmv_ref, wyy_ref, byy_ref,
                       y_out_ref, z_out_ref, *, temperature):
    f32 = jnp.float32
    bf16 = jnp.bfloat16
    B = xf_ref.shape[0]
    BT = xr_ref.shape[0]
    T = BT // B
    C = gu_ref.shape[1]
    Z = eps_ref.shape[1]

    # ---------------- q(y|x) ----------------
    xf = xf_ref[...].astype(bf16)
    h = jnp.dot(xf, w1_ref[...], preferred_element_type=f32) + b1_ref[...]
    h = jnp.where(h > 0, h, 0.2 * h)                                  # LeakyReLU(0.2)
    h = jnp.dot(h.astype(bf16), w2_ref[...], preferred_element_type=f32) + b2_ref[...]
    h = jnp.where(h > 0, h, 0.2 * h)
    logits = jnp.dot(h.astype(bf16), wl_ref[...], preferred_element_type=f32) + bl_ref[...]
    prob = _softmax_lastdim(logits)
    # Gumbel noise from uniform U in [0,1):  g = -log(-log(U+eps)+eps)  (EUP work, kept in-kernel)
    g = -jnp.log(-jnp.log(gu_ref[...] + 1e-20) + 1e-20)
    cat = _softmax_lastdim((logits + g) / temperature)

    # packed, zero-padded lane-dense y output slab: [logits | prob | cat | 0...]
    pad_y = y_out_ref.shape[1] - 3 * C
    y_parts = [logits, prob, cat]
    if pad_y:
        y_parts.append(jnp.zeros((B, pad_y), f32))
    y_out_ref[...] = jnp.concatenate(y_parts, axis=-1)

    # ------------- q(z|x,y)  +  generative p(z|y) heads -------------
    xr = xr_ref[...].astype(bf16)                                     # (B*T, Xd)
    hx = jnp.dot(xr, wz1x_ref[...], preferred_element_type=f32)       # x part of concat-matmul
    hc = jnp.dot(cat.astype(bf16), wz1c_ref[...], preferred_element_type=f32)   # (B, 64)
    hc_b = jnp.broadcast_to(hc[:, None, :], (B, T, hc.shape[-1])).reshape(BT, hc.shape[-1])
    h2 = jnp.maximum(hx + hc_b + bz1_ref[...], 0.0)                   # ReLU
    h3 = jnp.maximum(
        jnp.dot(h2.astype(bf16), wz2_ref[...], preferred_element_type=f32) + bz2_ref[...], 0.0)
    mv = jnp.dot(h3.astype(bf16), wmv_ref[...], preferred_element_type=f32) + bmv_ref[...]
    mu = mv[:, :Z]
    var = _softplus(mv[:, Z:])
    z = mu + eps_ref[...] * jnp.sqrt(var + 1e-10)
    yy = jnp.dot(z.astype(bf16), wyy_ref[...], preferred_element_type=f32) + byy_ref[...]
    ymean = yy[:, :Z]
    yvar = _softplus(yy[:, Z:])

    # packed, zero-padded lane-dense z output slab: [mu | var | z | y_mean | y_var | 0...]
    pad_z = z_out_ref.shape[1] - 5 * Z
    z_parts = [mu, var, z, ymean, yvar]
    if pad_z:
        z_parts.append(jnp.zeros((BT, pad_z), f32))
    z_out_ref[...] = jnp.concatenate(z_parts, axis=-1)


# ------------------------------ parameter init -------------------------------
def init_params(key, x_dim, z_dim, y_dim, time_step):
    """Deterministic xavier_normal_ weights stored as (in, out), pre-fused/split for the kernel.

    Mapping to the PyTorch module:
      w1,b1 / w2,b2 / wl,bl        : inference_qyx Linear(T*Xd,64), Linear(64,64), GumbelSoftmax.logits
      [wz1x;wz1c],bz1 / wz2,bz2    : inference_qzyx Linear(Xd+C,64) (split by input column), Linear(64,Xd)
      wmv=[wmu|wvar], bmv          : Gaussian.mu / Gaussian.var heads, column-fused
      wyy=[wymu|wyvar], byy        : GenerativeNet y_mu / y_var heads, column-fused
    Weights stored bf16 (MXU operands), biases f32 (epilogue adds).
    """
    def xavier(k, fi, fo):
        std = (2.0 / (fi + fo)) ** 0.5
        return jax.random.normal(k, (fi, fo), jnp.float32) * std

    ks = jax.random.split(key, 9)
    zeros = lambda n: jnp.zeros((1, n), jnp.float32)
    bf16 = jnp.bfloat16
    p = {}
    p["w1"], p["b1"] = xavier(ks[0], x_dim * time_step, DIM).astype(bf16), zeros(DIM)
    p["w2"], p["b2"] = xavier(ks[1], DIM, DIM).astype(bf16), zeros(DIM)
    p["wl"], p["bl"] = xavier(ks[2], DIM, y_dim).astype(bf16), zeros(y_dim)
    wz1 = xavier(ks[3], x_dim + y_dim, DIM)
    p["wz1x"] = wz1[:x_dim].astype(bf16)
    p["wz1c"] = wz1[x_dim:].astype(bf16)
    p["bz1"] = zeros(DIM)
    p["wz2"], p["bz2"] = xavier(ks[4], DIM, x_dim).astype(bf16), zeros(x_dim)
    wmu, wvar = xavier(ks[5], x_dim, z_dim), xavier(ks[6], x_dim, z_dim)
    p["wmv"], p["bmv"] = jnp.concatenate([wmu, wvar], axis=1).astype(bf16), zeros(2 * z_dim)
    wymu, wyvar = xavier(ks[7], y_dim, z_dim), xavier(ks[8], y_dim, z_dim)
    p["wyy"], p["byy"] = jnp.concatenate([wymu, wyvar], axis=1).astype(bf16), zeros(2 * z_dim)
    return p


# --------------------------------- forward -----------------------------------
def gmvae_forward(params, x, rng, temperature=1.0, hard=0):
    del hard  # TODO(synk): hard straight-through Gumbel-Softmax path not implemented (default hard=0)
    B, T, Xd = x.shape
    C = params["wl"].shape[1]          # y_dim / cate_dim
    Z = params["wmv"].shape[1] // 2    # z_dim
    f32 = jnp.float32

    # Reshape-module semantics: pure views of x, no data movement.
    x_flat = x.reshape(B, T * Xd)
    x_rows = x.reshape(B * T, Xd)
    kg, kn = jax.random.split(rng)
    gu = jax.random.uniform(kg, (B, C), f32)          # Gumbel base uniforms
    eps = jax.random.normal(kn, (B * T, Z), f32)      # reparameterization noise

    y_w = _round_up(3 * C, 128)        # packed + padded to 128 lanes -> unmasked stores
    z_w = _round_up(5 * Z, 128)

    ins = (x_flat, x_rows, gu, eps,
           params["w1"], params["b1"], params["w2"], params["b2"],
           params["wl"], params["bl"],
           params["wz1x"], params["wz1c"], params["bz1"],
           params["wz2"], params["bz2"],
           params["wmv"], params["bmv"], params["wyy"], params["byy"])

    # One fused call; at B*T=32 a single full-array VMEM block is optimal.
    # (At production batch sizes: tile rows at 128 over a parallel grid axis and
    #  size the tile for v7x's 64 MiB VMEM with double-buffering in mind.)
    y_slab, z_slab = pl.pallas_call(
        functools.partial(gmvae_fused_kernel, temperature=float(temperature)),
        grid=(1,),
        in_specs=[_full_spec(a.shape) for a in ins],
        out_specs=(_full_spec((B, y_w)), _full_spec((B * T, z_w))),
        out_shape=(jax.ShapeDtypeStruct((B, y_w), f32),
                   jax.ShapeDtypeStruct((B * T, z_w), f32)),
        compiler_params=pltpu.CompilerParams(dimension_semantics=("arbitrary",)),
    )(*ins)

    logits = y_slab[:, 0 * C:1 * C]
    prob = y_slab[:, 1 * C:2 * C]
    cat = y_slab[:, 2 * C:3 * C]
    smu = z_slab[:, 0 * Z:1 * Z]
    svar = z_slab[:, 1 * Z:2 * Z]
    zs = z_slab[:, 2 * Z:3 * Z]
    ymean = z_slab[:, 3 * Z:4 * Z]
    yvar = z_slab[:, 4 * Z:5 * Z]

    # InferenceNet unsqueezes every output at dim 1; generative heads keep z's shape.
    out = {
        "s_mu_infer": smu.reshape(B, 1, T, Z),
        "s_var_infer": svar.reshape(B, 1, T, Z),
        "logits": logits[:, None, :],
        "prob_cat": prob[:, None, :],
        "categorical": cat[:, None, :],
        "gaussian": zs.reshape(B, 1, T, Z),   # see note: missing key in reference code
        "y_mean": ymean.reshape(B, 1, T, Z),
        "y_var": yvar.reshape(B, 1, T, Z),
    }
    return out


if __name__ == "__main__":
    # small, module-consistent shapes
    B, T, x_dim = 4, 8, 16
    z_dim = 8
    y_dim = 8
    assert y_dim == z_dim, "generative(z, y) applies pzy to z -> requires y_dim == z_dim"

    key = jax.random.PRNGKey(0)
    kp, kx, kn = jax.random.split(key, 3)
    params = init_params(kp, x_dim, z_dim, y_dim, T)
    x = jax.random.normal(kx, (B, T, x_dim), jnp.float32)

    out = gmvae_forward(params, x, kn, temperature=1.0, hard=0)
    out = jax.block_until_ready(out)

    # light sanity checks on shapes + finiteness
    assert out["s_mu_infer"].shape == (B, 1, T, z_dim)
    assert out["logits"].shape == (B, 1, y_dim)
    assert out["prob_cat"].shape == (B, 1, y_dim)
    assert out["y_mean"].shape == (B, 1, T, z_dim)
    assert out["y_var"].shape == (B, 1, T, z_dim)
    for v in out.values():
        assert bool(jnp.all(jnp.isfinite(v)))

    print("KERNEL_OK")
</pallas_src>

<mosaic_0001>
module attributes {stable_mosaic.version = 11 : i64} {
  func.func @gmvae_fused_kernel(%arg0: i32, %arg1: memref<4x128xf32, #tpu.memory_space<vmem>>, %arg2: memref<32x16xf32, #tpu.memory_space<vmem>>, %arg3: memref<4x8xf32, #tpu.memory_space<vmem>>, %arg4: memref<32x8xf32, #tpu.memory_space<vmem>>, %arg5: memref<128x64xbf16, #tpu.memory_space<vmem>>, %arg6: memref<1x64xf32, #tpu.memory_space<vmem>>, %arg7: memref<64x64xbf16, #tpu.memory_space<vmem>>, %arg8: memref<1x64xf32, #tpu.memory_space<vmem>>, %arg9: memref<64x8xbf16, #tpu.memory_space<vmem>>, %arg10: memref<1x8xf32, #tpu.memory_space<vmem>>, %arg11: memref<16x64xbf16, #tpu.memory_space<vmem>>, %arg12: memref<8x64xbf16, #tpu.memory_space<vmem>>, %arg13: memref<1x64xf32, #tpu.memory_space<vmem>>, %arg14: memref<64x16xbf16, #tpu.memory_space<vmem>>, %arg15: memref<1x16xf32, #tpu.memory_space<vmem>>, %arg16: memref<16x16xbf16, #tpu.memory_space<vmem>>, %arg17: memref<1x16xf32, #tpu.memory_space<vmem>>, %arg18: memref<8x16xbf16, #tpu.memory_space<vmem>>, %arg19: memref<1x16xf32, #tpu.memory_space<vmem>>, %arg20: memref<4x128xf32, #tpu.memory_space<vmem>>, %arg21: memref<32x128xf32, #tpu.memory_space<vmem>>) attributes {dimension_semantics = [#tpu.dimension_semantics<arbitrary>], iteration_bounds = array<i64: 1>, scalar_prefetch = 0 : i64, scratch_operands = 0 : i64, tpu.core_type = #tpu.core_type<tc>, window_params = [{pipeline_mode = #tpu.pipeline_mode<synchronous>, transform_indices = @transform_0, window_bounds = array<i64: 4, 128>}, {pipeline_mode = #tpu.pipeline_mode<synchronous>, transform_indices = @transform_1, window_bounds = array<i64: 32, 16>}, {pipeline_mode = #tpu.pipeline_mode<synchronous>, transform_indices = @transform_2, window_bounds = array<i64: 4, 8>}, {pipeline_mode = #tpu.pipeline_mode<synchronous>, transform_indices = @transform_3, window_bounds = array<i64: 32, 8>}, {pipeline_mode = #tpu.pipeline_mode<synchronous>, transform_indices = @transform_4, window_bounds = array<i64: 128, 64>}, {pipeline_mode = #tpu.pipeline_mode<synchronous>, transform_indices = @transform_5, window_bounds = array<i64: 1, 64>}, {pipeline_mode = #tpu.pipeline_mode<synchronous>, transform_indices = @transform_6, window_bounds = array<i64: 64, 64>}, {pipeline_mode = #tpu.pipeline_mode<synchronous>, transform_indices = @transform_7, window_bounds = array<i64: 1, 64>}, {pipeline_mode = #tpu.pipeline_mode<synchronous>, transform_indices = @transform_8, window_bounds = array<i64: 64, 8>}, {pipeline_mode = #tpu.pipeline_mode<synchronous>, transform_indices = @transform_9, window_bounds = array<i64: 1, 8>}, {pipeline_mode = #tpu.pipeline_mode<synchronous>, transform_indices = @transform_10, window_bounds = array<i64: 16, 64>}, {pipeline_mode = #tpu.pipeline_mode<synchronous>, transform_indices = @transform_11, window_bounds = array<i64: 8, 64>}, {pipeline_mode = #tpu.pipeline_mode<synchronous>, transform_indices = @transform_12, window_bounds = array<i64: 1, 64>}, {pipeline_mode = #tpu.pipeline_mode<synchronous>, transform_indices = @transform_13, window_bounds = array<i64: 64, 16>}, {pipeline_mode = #tpu.pipeline_mode<synchronous>, transform_indices = @transform_14, window_bounds = array<i64: 1, 16>}, {pipeline_mode = #tpu.pipeline_mode<synchronous>, transform_indices = @transform_15, window_bounds = array<i64: 16, 16>}, {pipeline_mode = #tpu.pipeline_mode<synchronous>, transform_indices = @transform_16, window_bounds = array<i64: 1, 16>}, {pipeline_mode = #tpu.pipeline_mode<synchronous>, transform_indices = @transform_17, window_bounds = array<i64: 8, 16>}, {pipeline_mode = #tpu.pipeline_mode<synchronous>, transform_indices = @transform_18, window_bounds = array<i64: 1, 16>}, {pipeline_mode = #tpu.pipeline_mode<synchronous>, transform_indices = @transform_19, window_bounds = array<i64: 4, 128>}, {pipeline_mode = #tpu.pipeline_mode<synchronous>, transform_indices = @transform_20, window_bounds = array<i64: 32, 128>}]} {
    %c0 = arith.constant 0 : index
    %c0_0 = arith.constant 0 : index
    %0 = vector.load %arg1[%c0, %c0_0] : memref<4x128xf32, #tpu.memory_space<vmem>>, vector<4x128xf32>
    %1 = arith.truncf %0 : vector<4x128xf32> to vector<4x128xbf16>
    %c0_1 = arith.constant 0 : index
    %c0_2 = arith.constant 0 : index
    %2 = vector.load %arg5[%c0_1, %c0_2] : memref<128x64xbf16, #tpu.memory_space<vmem>>, vector<128x64xbf16>
    %cst = arith.constant dense<0.000000e+00> : vector<4x64xf32>
    %3 = tpu.matmul %1, %2, %cst {dimension_numbers = #tpu.dot_dimension_numbers<[1], [0], [0], [1], [0, 0, 1, 1], [], []>} : vector<4x128xbf16>, vector<128x64xbf16>, vector<4x64xf32> -> vector<4x64xf32>
    %c0_3 = arith.constant 0 : index
    %c0_4 = arith.constant 0 : index
    %4 = vector.load %arg6[%c0_3, %c0_4] : memref<1x64xf32, #tpu.memory_space<vmem>>, vector<1x64xf32>
    %5 = vector.broadcast %4 : vector<1x64xf32> to vector<4x64xf32>
    %6 = arith.addf %3, %5 : vector<4x64xf32>
    %cst_5 = arith.constant 0.000000e+00 : f32
    %7 = vector.broadcast %cst_5 : f32 to vector<4x64xf32>
    %8 = arith.cmpf ogt, %6, %7 : vector<4x64xf32>
    %cst_6 = arith.constant 2.000000e-01 : f32
    %9 = vector.broadcast %cst_6 : f32 to vector<4x64xf32>
    %10 = arith.mulf %9, %6 : vector<4x64xf32>
    %11 = arith.select %8, %6, %10 : vector<4x64xi1>, vector<4x64xf32>
    %12 = arith.truncf %11 : vector<4x64xf32> to vector<4x64xbf16>
    %c0_7 = arith.constant 0 : index
    %c0_8 = arith.constant 0 : index
    %13 = vector.load %arg7[%c0_7, %c0_8] : memref<64x64xbf16, #tpu.memory_space<vmem>>, vector<64x64xbf16>
    %cst_9 = arith.constant dense<0.000000e+00> : vector<4x64xf32>
    %14 = tpu.matmul %12, %13, %cst_9 {dimension_numbers = #tpu.dot_dimension_numbers<[1], [0], [0], [1], [0, 0, 1, 1], [], []>} : vector<4x64xbf16>, vector<64x64xbf16>, vector<4x64xf32> -> vector<4x64xf32>
    %c0_10 = arith.constant 0 : index
    %c0_11 = arith.constant 0 : index
    %15 = vector.load %arg8[%c0_10, %c0_11] : memref<1x64xf32, #tpu.memory_space<vmem>>, vector<1x64xf32>
    %16 = vector.broadcast %15 : vector<1x64xf32> to vector<4x64xf32>
    %17 = arith.addf %14, %16 : vector<4x64xf32>
    %cst_12 = arith.constant 0.000000e+00 : f32
    %18 = vector.broadcast %cst_12 : f32 to vector<4x64xf32>
    %19 = arith.cmpf ogt, %17, %18 : vector<4x64xf32>
    %cst_13 = arith.constant 2.000000e-01 : f32
    %20 = vector.broadcast %cst_13 : f32 to vector<4x64xf32>
    %21 = arith.mulf %20, %17 : vector<4x64xf32>
    %22 = arith.select %19, %17, %21 : vector<4x64xi1>, vector<4x64xf32>
    %23 = arith.truncf %22 : vector<4x64xf32> to vector<4x64xbf16>
    %c0_14 = arith.constant 0 : index
    %c0_15 = arith.constant 0 : index
    %24 = vector.load %arg9[%c0_14, %c0_15] : memref<64x8xbf16, #tpu.memory_space<vmem>>, vector<64x8xbf16>
    %cst_16 = arith.constant dense<0.000000e+00> : vector<4x8xf32>
    %25 = tpu.matmul %23, %24, %cst_16 {dimension_numbers = #tpu.dot_dimension_numbers<[1], [0], [0], [1], [0, 0, 1, 1], [], []>} : vector<4x64xbf16>, vector<64x8xbf16>, vector<4x8xf32> -> vector<4x8xf32>
    %c0_17 = arith.constant 0 : index
    %c0_18 = arith.constant 0 : index
    %26 = vector.load %arg10[%c0_17, %c0_18] : memref<1x8xf32, #tpu.memory_space<vmem>>, vector<1x8xf32>
    %27 = vector.broadcast %26 : vector<1x8xf32> to vector<4x8xf32>
    %28 = arith.addf %25, %27 : vector<4x8xf32>
    %cst_19 = arith.constant dense<0xFF800000> : vector<4xf32>
    %29 = vector.multi_reduction <maximumf>, %28, %cst_19 [1] : vector<4x8xf32> to vector<4xf32>
    %30 = vector.shape_cast %29 : vector<4xf32> to vector<4x1xf32>
    %31 = vector.broadcast %30 : vector<4x1xf32> to vector<4x8xf32>
    %32 = arith.subf %28, %31 : vector<4x8xf32>
    %33 = math.exp %32 : vector<4x8xf32>
    %cst_20 = arith.constant dense<0.000000e+00> : vector<4xf32>
    %34 = vector.multi_reduction <add>, %33, %cst_20 [1] : vector<4x8xf32> to vector<4xf32>
    %35 = vector.shape_cast %34 : vector<4xf32> to vector<4x1xf32>
    %36 = tpu.reciprocal %35 {approx = true} : vector<4x1xf32> -> vector<4x1xf32>
    %37 = vector.broadcast %36 : vector<4x1xf32> to vector<4x8xf32>
    %38 = arith.mulf %33, %37 : vector<4x8xf32>
    %c0_21 = arith.constant 0 : index
    %c0_22 = arith.constant 0 : index
    %39 = vector.load %arg3[%c0_21, %c0_22] : memref<4x8xf32, #tpu.memory_space<vmem>>, vector<4x8xf32>
    %cst_23 = arith.constant 9.99999968E-21 : f32
    %40 = vector.broadcast %cst_23 : f32 to vector<4x8xf32>
    %41 = arith.addf %39, %40 : vector<4x8xf32>
    %42 = math.log %41 : vector<4x8xf32>
    %cst_24 = arith.constant 0.000000e+00 : f32
    %43 = vector.broadcast %cst_24 : f32 to vector<4x8xf32>
    %44 = arith.subf %43, %42 : vector<4x8xf32>
    %cst_25 = arith.constant 9.99999968E-21 : f32
    %45 = vector.broadcast %cst_25 : f32 to vector<4x8xf32>
    %46 = arith.addf %44, %45 : vector<4x8xf32>
    %47 = math.log %46 : vector<4x8xf32>
    %cst_26 = arith.constant 0.000000e+00 : f32
    %48 = vector.broadcast %cst_26 : f32 to vector<4x8xf32>
    %49 = arith.subf %48, %47 : vector<4x8xf32>
    %50 = arith.addf %28, %49 : vector<4x8xf32>
    %cst_27 = arith.constant 1.000000e+00 : f32
    %51 = vector.broadcast %cst_27 : f32 to vector<4x8xf32>
    %52 = arith.divf %50, %51 : vector<4x8xf32>
    %cst_28 = arith.constant dense<0xFF800000> : vector<4xf32>
    %53 = vector.multi_reduction <maximumf>, %52, %cst_28 [1] : vector<4x8xf32> to vector<4xf32>
    %54 = vector.shape_cast %53 : vector<4xf32> to vector<4x1xf32>
    %55 = vector.broadcast %54 : vector<4x1xf32> to vector<4x8xf32>
    %56 = arith.subf %52, %55 : vector<4x8xf32>
    %57 = math.exp %56 : vector<4x8xf32>
    %cst_29 = arith.constant dense<0.000000e+00> : vector<4xf32>
    %58 = vector.multi_reduction <add>, %57, %cst_29 [1] : vector<4x8xf32> to vector<4xf32>
    %59 = vector.shape_cast %58 : vector<4xf32> to vector<4x1xf32>
    %60 = tpu.reciprocal %59 {approx = true} : vector<4x1xf32> -> vector<4x1xf32>
    %61 = vector.broadcast %60 : vector<4x1xf32> to vector<4x8xf32>
    %62 = arith.mulf %57, %61 : vector<4x8xf32>
    %cst_30 = arith.constant 0.000000e+00 : f32
    %63 = vector.broadcast %cst_30 : f32 to vector<4x104xf32>
    %64 = tpu.concatenate %28, %38, %62, %63 in 1 : vector<4x8xf32>, vector<4x8xf32>, vector<4x8xf32>, vector<4x104xf32> -> vector<4x128xf32>
    %c0_31 = arith.constant 0 : index
    %c0_32 = arith.constant 0 : index
    %65 = vector.load %arg20[%c0_31, %c0_32] : memref<4x128xf32, #tpu.memory_space<vmem>>, vector<4x128xf32>
    tpu.vector_store %arg20[%c0_31, %c0_32], %64 {strides = array<i32>} : memref<4x128xf32, #tpu.memory_space<vmem>>, vector<4x128xf32>,
    %c0_33 = arith.constant 0 : index
    %c0_34 = arith.constant 0 : index
    %66 = vector.load %arg2[%c0_33, %c0_34] : memref<32x16xf32, #tpu.memory_space<vmem>>, vector<32x16xf32>
    %67 = arith.truncf %66 : vector<32x16xf32> to vector<32x16xbf16>
    %c0_35 = arith.constant 0 : index
    %c0_36 = arith.constant 0 : index
    %68 = vector.load %arg11[%c0_35, %c0_36] : memref<16x64xbf16, #tpu.memory_space<vmem>>, vector<16x64xbf16>
    %cst_37 = arith.constant dense<0.000000e+00> : vector<32x64xf32>
    %69 = tpu.matmul %67, %68, %cst_37 {dimension_numbers = #tpu.dot_dimension_numbers<[1], [0], [0], [1], [0, 0, 1, 1], [], []>} : vector<32x16xbf16>, vector<16x64xbf16>, vector<32x64xf32> -> vector<32x64xf32>
    %70 = arith.truncf %62 : vector<4x8xf32> to vector<4x8xbf16>
    %c0_38 = arith.constant 0 : index
    %c0_39 = arith.constant 0 : index
    %71 = vector.load %arg12[%c0_38, %c0_39] : memref<8x64xbf16, #tpu.memory_space<vmem>>, vector<8x64xbf16>
    %cst_40 = arith.constant dense<0.000000e+00> : vector<4x64xf32>
    %72 = tpu.matmul %70, %71, %cst_40 {dimension_numbers = #tpu.dot_dimension_numbers<[1], [0], [0], [1], [0, 0, 1, 1], [], []>} : vector<4x8xbf16>, vector<8x64xbf16>, vector<4x64xf32> -> vector<4x64xf32>
    %73 = vector.shape_cast %72 : vector<4x64xf32> to vector<4x1x64xf32>
    %74 = vector.shape_cast %73 : vector<4x1x64xf32> to vector<4x1x64xf32>
    %75 = vector.broadcast %74 : vector<4x1x64xf32> to vector<4x8x64xf32>
    %76 = vector.shape_cast %75 : vector<4x8x64xf32> to vector<32x64xf32>
    %77 = arith.addf %69, %76 : vector<32x64xf32>
    %c0_41 = arith.constant 0 : index
    %c0_42 = arith.constant 0 : index
    %78 = vector.load %arg13[%c0_41, %c0_42] : memref<1x64xf32, #tpu.memory_space<vmem>>, vector<1x64xf32>
    %79 = vector.broadcast %78 : vector<1x64xf32> to vector<32x64xf32>
    %80 = arith.addf %77, %79 : vector<32x64xf32>
    %cst_43 = arith.constant 0.000000e+00 : f32
    %81 = vector.broadcast %cst_43 : f32 to vector<32x64xf32>
    %82 = arith.maximumf %80, %81 : vector<32x64xf32>
    %83 = arith.truncf %82 : vector<32x64xf32> to vector<32x64xbf16>
    %c0_44 = arith.constant 0 : index
    %c0_45 = arith.constant 0 : index
    %84 = vector.load %arg14[%c0_44, %c0_45] : memref<64x16xbf16, #tpu.memory_space<vmem>>, vector<64x16xbf16>
    %cst_46 = arith.constant dense<0.000000e+00> : vector<32x16xf32>
    %85 = tpu.matmul %83, %84, %cst_46 {dimension_numbers = #tpu.dot_dimension_numbers<[1], [0], [0], [1], [0, 0, 1, 1], [], []>} : vector<32x64xbf16>, vector<64x16xbf16>, vector<32x16xf32> -> vector<32x16xf32>
    %c0_47 = arith.constant 0 : index
    %c0_48 = arith.constant 0 : index
    %86 = vector.load %arg15[%c0_47, %c0_48] : memref<1x16xf32, #tpu.memory_space<vmem>>, vector<1x16xf32>
    %87 = vector.broadcast %86 : vector<1x16xf32> to vector<32x16xf32>
    %88 = arith.addf %85, %87 : vector<32x16xf32>
    %cst_49 = arith.constant 0.000000e+00 : f32
    %89 = vector.broadcast %cst_49 : f32 to vector<32x16xf32>
    %90 = arith.maximumf %88, %89 : vector<32x16xf32>
    %91 = arith.truncf %90 : vector<32x16xf32> to vector<32x16xbf16>
    %c0_50 = arith.constant 0 : index
    %c0_51 = arith.constant 0 : index
    %92 = vector.load %arg16[%c0_50, %c0_51] : memref<16x16xbf16, #tpu.memory_space<vmem>>, vector<16x16xbf16>
    %cst_52 = arith.constant dense<0.000000e+00> : vector<32x16xf32>
    %93 = tpu.matmul %91, %92, %cst_52 {dimension_numbers = #tpu.dot_dimension_numbers<[1], [0], [0], [1], [0, 0, 1, 1], [], []>} : vector<32x16xbf16>, vector<16x16xbf16>, vector<32x16xf32> -> vector<32x16xf32>
    %c0_53 = arith.constant 0 : index
    %c0_54 = arith.constant 0 : index
    %94 = vector.load %arg17[%c0_53, %c0_54] : memref<1x16xf32, #tpu.memory_space<vmem>>, vector<1x16xf32>
    %95 = vector.broadcast %94 : vector<1x16xf32> to vector<32x16xf32>
    %96 = arith.addf %93, %95 : vector<32x16xf32>
    %97 = vector.extract_strided_slice %96 {offsets = [0, 0], sizes = [32, 8], strides = [1, 1]} : vector<32x16xf32> to vector<32x8xf32>
    %98 = vector.extract_strided_slice %96 {offsets = [0, 8], sizes = [32, 8], strides = [1, 1]} : vector<32x16xf32> to vector<32x8xf32>
    %cst_55 = arith.constant 0.000000e+00 : f32
    %99 = vector.broadcast %cst_55 : f32 to vector<32x8xf32>
    %100 = arith.maximumf %98, %99 : vector<32x8xf32>
    %101 = math.absf %98 : vector<32x8xf32>
    %cst_56 = arith.constant 0.000000e+00 : f32
    %102 = vector.broadcast %cst_56 : f32 to vector<32x8xf32>
    %103 = arith.subf %102, %101 : vector<32x8xf32>
    %104 = math.exp %103 : vector<32x8xf32>
    %105 = math.log1p %104 : vector<32x8xf32>
    %106 = arith.addf %100, %105 : vector<32x8xf32>
    %c0_57 = arith.constant 0 : index
    %c0_58 = arith.constant 0 : index
    %107 = vector.load %arg4[%c0_57, %c0_58] : memref<32x8xf32, #tpu.memory_space<vmem>>, vector<32x8xf32>
    %cst_59 = arith.constant 1.000000e-10 : f32
    %108 = vector.broadcast %cst_59 : f32 to vector<32x8xf32>
    %109 = arith.addf %106, %108 : vector<32x8xf32>
    %110 = math.sqrt %109 : vector<32x8xf32>
    %111 = arith.mulf %107, %110 : vector<32x8xf32>
    %112 = arith.addf %97, %111 : vector<32x8xf32>
    %113 = arith.truncf %112 : vector<32x8xf32> to vector<32x8xbf16>
    %c0_60 = arith.constant 0 : index
    %c0_61 = arith.constant 0 : index
    %114 = vector.load %arg18[%c0_60, %c0_61] : memref<8x16xbf16, #tpu.memory_space<vmem>>, vector<8x16xbf16>
    %cst_62 = arith.constant dense<0.000000e+00> : vector<32x16xf32>
    %115 = tpu.matmul %113, %114, %cst_62 {dimension_numbers = #tpu.dot_dimension_numbers<[1], [0], [0], [1], [0, 0, 1, 1], [], []>} : vector<32x8xbf16>, vector<8x16xbf16>, vector<32x16xf32> -> vector<32x16xf32>
    %c0_63 = arith.constant 0 : index
    %c0_64 = arith.constant 0 : index
    %116 = vector.load %arg19[%c0_63, %c0_64] : memref<1x16xf32, #tpu.memory_space<vmem>>, vector<1x16xf32>
    %117 = vector.broadcast %116 : vector<1x16xf32> to vector<32x16xf32>
    %118 = arith.addf %115, %117 : vector<32x16xf32>
    %119 = vector.extract_strided_slice %118 {offsets = [0, 0], sizes = [32, 8], strides = [1, 1]} : vector<32x16xf32> to vector<32x8xf32>
    %120 = vector.extract_strided_slice %118 {offsets = [0, 8], sizes = [32, 8], strides = [1, 1]} : vector<32x16xf32> to vector<32x8xf32>
    %cst_65 = arith.constant 0.000000e+00 : f32
    %121 = vector.broadcast %cst_65 : f32 to vector<32x8xf32>
    %122 = arith.maximumf %120, %121 : vector<32x8xf32>
    %123 = math.absf %120 : vector<32x8xf32>
    %cst_66 = arith.constant 0.000000e+00 : f32
    %124 = vector.broadcast %cst_66 : f32 to vector<32x8xf32>
    %125 = arith.subf %124, %123 : vector<32x8xf32>
    %126 = math.exp %125 : vector<32x8xf32>
    %127 = math.log1p %126 : vector<32x8xf32>
    %128 = arith.addf %122, %127 : vector<32x8xf32>
    %cst_67 = arith.constant 0.000000e+00 : f32
    %129 = vector.broadcast %cst_67 : f32 to vector<32x88xf32>
    %130 = tpu.concatenate %97, %106, %112, %119, %128, %129 in 1 : vector<32x8xf32>, vector<32x8xf32>, vector<32x8xf32>, vector<32x8xf32>, vector<32x8xf32>, vector<32x88xf32> -> vector<32x128xf32>
    %c0_68 = arith.constant 0 : index
    %c0_69 = arith.constant 0 : index
    %131 = vector.load %arg21[%c0_68, %c0_69] : memref<32x128xf32, #tpu.memory_space<vmem>>, vector<32x128xf32>
    tpu.vector_store %arg21[%c0_68, %c0_69], %130 {strides = array<i32>} : memref<32x128xf32, #tpu.memory_space<vmem>>, vector<32x128xf32>,
    return
  }
  func.func @transform_0(%arg0: i32) -> (i32, i32) {
    %c0_i32 = arith.constant 0 : i32
    %c0_i32_0 = arith.constant 0 : i32
    %c0_i32_1 = arith.constant 0 : i32
    return %c0_i32, %c0_i32_0 : i32, i32
  }
  func.func @transform_1(%arg0: i32) -> (i32, i32) {
    %c0_i32 = arith.constant 0 : i32
    %c0_i32_0 = arith.constant 0 : i32
    %c0_i32_1 = arith.constant 0 : i32
    return %c0_i32, %c0_i32_0 : i32, i32
  }
  func.func @transform_2(%arg0: i32) -> (i32, i32) {
    %c0_i32 = arith.constant 0 : i32
    %c0_i32_0 = arith.constant 0 : i32
    %c0_i32_1 = arith.constant 0 : i32
    return %c0_i32, %c0_i32_0 : i32, i32
  }
  func.func @transform_3(%arg0: i32) -> (i32, i32) {
    %c0_i32 = arith.constant 0 : i32
    %c0_i32_0 = arith.constant 0 : i32
    %c0_i32_1 = arith.constant 0 : i32
    return %c0_i32, %c0_i32_0 : i32, i32
  }
  func.func @transform_4(%arg0: i32) -> (i32, i32) {
    %c0_i32 = arith.constant 0 : i32
    %c0_i32_0 = arith.constant 0 : i32
    %c0_i32_1 = arith.constant 0 : i32
    return %c0_i32, %c0_i32_0 : i32, i32
  }
  func.func @transform_5(%arg0: i32) -> (i32, i32) {
    %c0_i32 = arith.constant 0 : i32
    %c0_i32_0 = arith.constant 0 : i32
    %c0_i32_1 = arith.constant 0 : i32
    return %c0_i32, %c0_i32_0 : i32, i32
  }
  func.func @transform_6(%arg0: i32) -> (i32, i32) {
    %c0_i32 = arith.constant 0 : i32
    %c0_i32_0 = arith.constant 0 : i32
    %c0_i32_1 = arith.constant 0 : i32
    return %c0_i32, %c0_i32_0 : i32, i32
  }
  func.func @transform_7(%arg0: i32) -> (i32, i32) {
    %c0_i32 = arith.constant 0 : i32
    %c0_i32_0 = arith.constant 0 : i32
    %c0_i32_1 = arith.constant 0 : i32
    return %c0_i32, %c0_i32_0 : i32, i32
  }
  func.func @transform_8(%arg0: i32) -> (i32, i32) {
    %c0_i32 = arith.constant 0 : i32
    %c0_i32_0 = arith.constant 0 : i32
    %c0_i32_1 = arith.constant 0 : i32
    return %c0_i32, %c0_i32_0 : i32, i32
  }
  func.func @transform_9(%arg0: i32) -> (i32, i32) {
    %c0_i32 = arith.constant 0 : i32
    %c0_i32_0 = arith.constant 0 : i32
    %c0_i32_1 = arith.constant 0 : i32
    return %c0_i32, %c0_i32_0 : i32, i32
  }
  func.func @transform_10(%arg0: i32) -> (i32, i32) {
    %c0_i32 = arith.constant 0 : i32
    %c0_i32_0 = arith.constant 0 : i32
    %c0_i32_1 = arith.constant 0 : i32
    return %c0_i32, %c0_i32_0 : i32, i32
  }
  func.func @transform_11(%arg0: i32) -> (i32, i32) {
    %c0_i32 = arith.constant 0 : i32
    %c0_i32_0 = arith.constant 0 : i32
    %c0_i32_1 = arith.constant 0 : i32
    return %c0_i32, %c0_i32_0 : i32, i32
  }
  func.func @transform_12(%arg0: i32) -> (i32, i32) {
    %c0_i32 = arith.constant 0 : i32
    %c0_i32_0 = arith.constant 0 : i32
    %c0_i32_1 = arith.constant 0 : i32
    return %c0_i32, %c0_i32_0 : i32, i32
  }
  func.func @transform_13(%arg0: i32) -> (i32, i32) {
    %c0_i32 = arith.constant 0 : i32
    %c0_i32_0 = arith.constant 0 : i32
    %c0_i32_1 = arith.constant 0 : i32
    return %c0_i32, %c0_i32_0 : i32, i32
  }
  func.func @transform_14(%arg0: i32) -> (i32, i32) {
    %c0_i32 = arith.constant 0 : i32
    %c0_i32_0 = arith.constant 0 : i32
    %c0_i32_1 = arith.constant 0 : i32
    return %c0_i32, %c0_i32_0 : i32, i32
  }
  func.func @transform_15(%arg0: i32) -> (i32, i32) {
    %c0_i32 = arith.constant 0 : i32
    %c0_i32_0 = arith.constant 0 : i32
    %c0_i32_1 = arith.constant 0 : i32
    return %c0_i32, %c0_i32_0 : i32, i32
  }
  func.func @transform_16(%arg0: i32) -> (i32, i32) {
    %c0_i32 = arith.constant 0 : i32
    %c0_i32_0 = arith.constant 0 : i32
    %c0_i32_1 = arith.constant 0 : i32
    return %c0_i32, %c0_i32_0 : i32, i32
  }
  func.func @transform_17(%arg0: i32) -> (i32, i32) {
    %c0_i32 = arith.constant 0 : i32
    %c0_i32_0 = arith.constant 0 : i32
    %c0_i32_1 = arith.constant 0 : i32
    return %c0_i32, %c0_i32_0 : i32, i32
  }
  func.func @transform_18(%arg0: i32) -> (i32, i32) {
    %c0_i32 = arith.constant 0 : i32
    %c0_i32_0 = arith.constant 0 : i32
    %c0_i32_1 = arith.constant 0 : i32
    return %c0_i32, %c0_i32_0 : i32, i32
  }
  func.func @transform_19(%arg0: i32) -> (i32, i32) {
    %c0_i32 = arith.constant 0 : i32
    %c0_i32_0 = arith.constant 0 : i32
    %c0_i32_1 = arith.constant 0 : i32
    return %c0_i32, %c0_i32_0 : i32, i32
  }
  func.func @transform_20(%arg0: i32) -> (i32, i32) {
    %c0_i32 = arith.constant 0 : i32
    %c0_i32_0 = arith.constant 0 : i32
    %c0_i32_1 = arith.constant 0 : i32
    return %c0_i32, %c0_i32_0 : i32, i32
  }
}

</mosaic_0001>

<llo_original>
// kernel: tpu_custom_call.1
$region0: #{tpu_custom_call.1}
  #allocation0 [shape = 'u32[]', space=smem, size = 0x4, offset = 0x4, fixed_abs, tag = 'smem constant byte address 0x4 - core index']
  #allocation1 [shape = 'u32[144,128]{1,0:T(1,128)}', space=vmem, size = 0x12000, scoped, tag = 'internal scratch']
  %s0 = inlined_call_operand.vmem [shape: f32[4,128], index: 0, kind: input, shape index: {}]
  %s1 = inlined_call_operand.vmem [shape: f32[32,16], index: 1, kind: input, shape index: {}]
  %s2 = inlined_call_operand.vmem [shape: f32[4,8], index: 2, kind: input, shape index: {}]
  %s3 = inlined_call_operand.vmem [shape: f32[32,8], index: 3, kind: input, shape index: {}]
  %s4 = inlined_call_operand.vmem [shape: bf16[128,64], index: 4, kind: input, shape index: {}]
  %s5 = inlined_call_operand.vmem [shape: f32[1,64], index: 5, kind: input, shape index: {}]
  %s6 = inlined_call_operand.vmem [shape: bf16[64,64], index: 6, kind: input, shape index: {}]
  %s7 = inlined_call_operand.vmem [shape: f32[1,64], index: 7, kind: input, shape index: {}]
  %s8 = inlined_call_operand.vmem [shape: bf16[64,8], index: 8, kind: input, shape index: {}]
  %s9 = inlined_call_operand.vmem [shape: f32[1,8], index: 9, kind: input, shape index: {}]
  %s10 = inlined_call_operand.vmem [shape: bf16[16,64], index: 10, kind: input, shape index: {}]
  %s11 = inlined_call_operand.vmem [shape: bf16[8,64], index: 11, kind: input, shape index: {}]
  %s12 = inlined_call_operand.vmem [shape: f32[1,64], index: 12, kind: input, shape index: {}]
  %s13 = inlined_call_operand.vmem [shape: bf16[64,16], index: 13, kind: input, shape index: {}]
  %s14 = inlined_call_operand.vmem [shape: f32[1,16], index: 14, kind: input, shape index: {}]
  %s15 = inlined_call_operand.vmem [shape: bf16[16,16], index: 15, kind: input, shape index: {}]
  %s16 = inlined_call_operand.vmem [shape: f32[1,16], index: 16, kind: input, shape index: {}]
  %s17 = inlined_call_operand.vmem [shape: bf16[8,16], index: 17, kind: input, shape index: {}]
  %s18 = inlined_call_operand.vmem [shape: f32[1,16], index: 18, kind: input, shape index: {}]
  %s19 = inlined_call_operand.hbm [shape: f32[4,128], index: 19, kind: output, shape index: {0}]
  %s20 = inlined_call_operand.hbm [shape: f32[32,128], index: 20, kind: output, shape index: {1}]
  %21 = xla_tuple %s19, %s20
  %s22 = sld [smem:[#allocation0]]
  $region94: #{tpu_custom_call.1} parent=0
    _
  %s24 = ssub.s32 1, %s22
  %s25 = scalar_select 0, %s24, %s22
  $region1: #{tpu_custom_call.1} parent=0
    #allocation2 [shape = 'u8[2048]{0}', space=vmem, size = 0x800, scoped, tag = 'output window, operand 0, single buffered']
    #allocation3 [shape = 's32[1]{0}', space=sflag, size = 0x4, scoped, tag = 'scoped memory for tpu_custom_call.1']
    #allocation4 [shape = 'u8[16384]{0}', space=vmem, size = 0x4000, scoped, tag = 'output window, operand 1, single buffered']
    #allocation5 [shape = 's32[1]{0}', space=sflag, size = 0x4, scoped, tag = 'scoped memory for tpu_custom_call.1']
    %26 = vsyncpa [#allocation3], 0
    %27 = vsyncpa [#allocation5], 0
    // Predicated region
    $region2: #{tpu_custom_call.1} parent=1 // pred_check
      _
    $region3: #{tpu_custom_call.1} parent=1 // pred_check_branch
      %29 = sbr.rel (0) target = $region5
    $region4: #{tpu_custom_call.1} parent=1 // pred_region
      _
    $region5: #{tpu_custom_call.1} parent=1 // pred_fallthru
      _
    // Predicated region
    $region6: #{tpu_custom_call.1} parent=1 // pred_check
      _
    $region7: #{tpu_custom_call.1} parent=1 // pred_check_branch
      %31 = sbr.rel (0) target = $region9
    $region8: #{tpu_custom_call.1} parent=1 // pred_region
      _
    $region9: #{tpu_custom_call.1} parent=1 // pred_fallthru
      _
    // Predicated region
    $region10: #{tpu_custom_call.1} parent=1 // pred_check
      _
    $region11: #{tpu_custom_call.1} parent=1 // pred_check_branch
      %33 = sbr.rel (0) target = $region13
    $region12: #{tpu_custom_call.1} parent=1 // pred_region
      _
    $region13: #{tpu_custom_call.1} parent=1 // pred_fallthru
      _
    // Predicated region
    $region14: #{tpu_custom_call.1} parent=1 // pred_check
      _
    $region15: #{tpu_custom_call.1} parent=1 // pred_check_branch
      %35 = sbr.rel (0) target = $region17
    $region16: #{tpu_custom_call.1} parent=1 // pred_region
      _
    $region17: #{tpu_custom_call.1} parent=1 // pred_fallthru
      _
    // Predicated region
    $region18: #{tpu_custom_call.1} parent=1 // pred_check
      _
    $region19: #{tpu_custom_call.1} parent=1 // pred_check_branch
      %37 = sbr.rel (0) target = $region21
    $region20: #{tpu_custom_call.1} parent=1 // pred_region
      _
    $region21: #{tpu_custom_call.1} parent=1 // pred_fallthru
      _
    // Predicated region
    $region22: #{tpu_custom_call.1} parent=1 // pred_check
      _
    $region23: #{tpu_custom_call.1} parent=1 // pred_check_branch
      %39 = sbr.rel (0) target = $region25
    $region24: #{tpu_custom_call.1} parent=1 // pred_region
      _
    $region25: #{tpu_custom_call.1} parent=1 // pred_fallthru
      _
    // Predicated region
    $region26: #{tpu_custom_call.1} parent=1 // pred_check
      _
    $region27: #{tpu_custom_call.1} parent=1 // pred_check_branch
      %41 = sbr.rel (0) target = $region29
    $region28: #{tpu_custom_call.1} parent=1 // pred_region
      _
    $region29: #{tpu_custom_call.1} parent=1 // pred_fallthru
      _
    // Predicated region
    $region30: #{tpu_custom_call.1} parent=1 // pred_check
      _
    $region31: #{tpu_custom_call.1} parent=1 // pred_check_branch
      %43 = sbr.rel (0) target = $region33
    $region32: #{tpu_custom_call.1} parent=1 // pred_region
      _
    $region33: #{tpu_custom_call.1} parent=1 // pred_fallthru
      _
    // Predicated region
    $region34: #{tpu_custom_call.1} parent=1 // pred_check
      _
    $region35: #{tpu_custom_call.1} parent=1 // pred_check_branch
      %45 = sbr.rel (0) target = $region37
    $region36: #{tpu_custom_call.1} parent=1 // pred_region
      _
    $region37: #{tpu_custom_call.1} parent=1 // pred_fallthru
      _
    // Predicated region
    $region38: #{tpu_custom_call.1} parent=1 // pred_check
      _
    $region39: #{tpu_custom_call.1} parent=1 // pred_check_branch
      %47 = sbr.rel (0) target = $region41
    $region40: #{tpu_custom_call.1} parent=1 // pred_region
      _
    $region41: #{tpu_custom_call.1} parent=1 // pred_fallthru
      _
    // Predicated region
    $region42: #{tpu_custom_call.1} parent=1 // pred_check
      _
    $region43: #{tpu_custom_call.1} parent=1 // pred_check_branch
      %49 = sbr.rel (0) target = $region45
    $region44: #{tpu_custom_call.1} parent=1 // pred_region
      _
    $region45: #{tpu_custom_call.1} parent=1 // pred_fallthru
      _
    // Predicated region
    $region46: #{tpu_custom_call.1} parent=1 // pred_check
      _
    $region47: #{tpu_custom_call.1} parent=1 // pred_check_branch
      %51 = sbr.rel (0) target = $region49
    $region48: #{tpu_custom_call.1} parent=1 // pred_region
      _
    $region49: #{tpu_custom_call.1} parent=1 // pred_fallthru
      _
    // Predicated region
    $region50: #{tpu_custom_call.1} parent=1 // pred_check
      _
    $region51: #{tpu_custom_call.1} parent=1 // pred_check_branch
      %53 = sbr.rel (0) target = $region53
    $region52: #{tpu_custom_call.1} parent=1 // pred_region
      _
    $region53: #{tpu_custom_call.1} parent=1 // pred_fallthru
      _
    // Predicated region
    $region54: #{tpu_custom_call.1} parent=1 // pred_check
      _
    $region55: #{tpu_custom_call.1} parent=1 // pred_check_branch
      %55 = sbr.rel (0) target = $region57
    $region56: #{tpu_custom_call.1} parent=1 // pred_region
      _
    $region57: #{tpu_custom_call.1} parent=1 // pred_fallthru
      _
    // Predicated region
    $region58: #{tpu_custom_call.1} parent=1 // pred_check
      _
    $region59: #{tpu_custom_call.1} parent=1 // pred_check_branch
      %57 = sbr.rel (0) target = $region61
    $region60: #{tpu_custom_call.1} parent=1 // pred_region
      _
    $region61: #{tpu_custom_call.1} parent=1 // pred_fallthru
      _
    // Predicated region
    $region62: #{tpu_custom_call.1} parent=1 // pred_check
      _
    $region63: #{tpu_custom_call.1} parent=1 // pred_check_branch
      %59 = sbr.rel (0) target = $region65
    $region64: #{tpu_custom_call.1} parent=1 // pred_region
      _
    $region65: #{tpu_custom_call.1} parent=1 // pred_fallthru
      _
    // Predicated region
    $region66: #{tpu_custom_call.1} parent=1 // pred_check
      _
    $region67: #{tpu_custom_call.1} parent=1 // pred_check_branch
      %61 = sbr.rel (0) target = $region69
    $region68: #{tpu_custom_call.1} parent=1 // pred_region
      _
    $region69: #{tpu_custom_call.1} parent=1 // pred_fallthru
      _
    // Predicated region
    $region70: #{tpu_custom_call.1} parent=1 // pred_check
      _
    $region71: #{tpu_custom_call.1} parent=1 // pred_check_branch
      %63 = sbr.rel (0) target = $region73
    $region72: #{tpu_custom_call.1} parent=1 // pred_region
      _
    $region73: #{tpu_custom_call.1} parent=1 // pred_fallthru
      _
    // Predicated region
    $region74: #{tpu_custom_call.1} parent=1 // pred_check
      _
    $region75: #{tpu_custom_call.1} parent=1 // pred_check_branch
      %65 = sbr.rel (0) target = $region77
    $region76: #{tpu_custom_call.1} parent=1 // pred_region
      _
    $region77: #{tpu_custom_call.1} parent=1 // pred_fallthru
      _
    %v67 = vld [vmem:[%s0] sm:$0xf]
    %v68 = vpack.c.bf16 %v67, %v67
    %v69 = vld [vmem:[%s4] sm:$0xf]
    %v70 = vld [vmem:[%s4 + $0x4] sm:$0xf]
    %v71 = vld [vmem:[%s4 + $0x8] sm:$0xf]
    %v72 = vld [vmem:[%s4 + $0xc] sm:$0xf]
    %v73 = vld [vmem:[%s4 + $0x10] sm:$0xf]
    %v74 = vld [vmem:[%s4 + $0x14] sm:$0xf]
    %v75 = vld [vmem:[%s4 + $0x18] sm:$0xf]
    %v76 = vld [vmem:[%s4 + $0x1c] sm:$0xf]
    %v77 = vld [vmem:[%s4 + $0x20] sm:$0xf]
    %v78 = vld [vmem:[%s4 + $0x24] sm:$0xf]
    %v79 = vld [vmem:[%s4 + $0x28] sm:$0xf]
    %v80 = vld [vmem:[%s4 + $0x2c] sm:$0xf]
    %v81 = vld [vmem:[%s4 + $0x30] sm:$0xf]
    %v82 = vld [vmem:[%s4 + $0x34] sm:$0xf]
    %v83 = vld [vmem:[%s4 + $0x38] sm:$0xf]
    %v84 = vld [vmem:[%s4 + $0x3c] sm:$0xf]
    %v85 = vld [vmem:[%s5] sm:$0x1]
    %v87 = vlaneseq
    %v88 = vshrl.u32 %v87, 7
    %v89 = vsub.s32 0, %v88
    %v90 = vrot.slane %v85, %v89
    %v108 = vunpack.c.l.b16 %v69
    %v109 = vunpack.c.l.b16 %v70
    %v110 = vunpack.c.l.b16 %v71
    %v111 = vunpack.c.l.b16 %v72
    %v112 = vunpack.c.l.b16 %v73
    %v113 = vunpack.c.l.b16 %v74
    %v114 = vunpack.c.l.b16 %v75
    %v115 = vunpack.c.l.b16 %v76
    %v116 = vunpack.c.l.b16 %v77
    %v117 = vunpack.c.l.b16 %v78
    %v118 = vunpack.c.l.b16 %v79
    %v119 = vunpack.c.l.b16 %v80
    %v120 = vunpack.c.l.b16 %v81
    %v121 = vunpack.c.l.b16 %v82
    %v122 = vunpack.c.l.b16 %v83
    %v123 = vunpack.c.l.b16 %v84
    %v124 = vpack.c.b16 %v109, %v108
    %v125 = vpack.c.b16 %v111, %v110
    %v126 = vpack.c.b16 %v113, %v112
    %v127 = vpack.c.b16 %v115, %v114
    %v128 = vpack.c.b16 %v117, %v116
    %v129 = vpack.c.b16 %v119, %v118
    %v130 = vpack.c.b16 %v121, %v120
    %v131 = vpack.c.b16 %v123, %v122
    %140 = vmatprep.subr.bf16.mxu0 0
    %141 = vmatpush1.bf16.msra.mxu0 %v131
    %142 = vmatprep.subr.bf16.mxu0 0
    %143 = vmatpush1.bf16.msra.mxu0 %v130
    %144 = vmatprep.subr.bf16.mxu0 0
    %145 = vmatpush1.bf16.msra.mxu0 %v129
    %146 = vmatprep.subr.bf16.mxu0 0
    %147 = vmatpush1.bf16.msra.mxu0 %v128
    %148 = vmatprep.subr.bf16.mxu0 0
    %149 = vmatpush1.bf16.msra.mxu0 %v127
    %150 = vmatprep.subr.bf16.mxu0 0
    %151 = vmatpush1.bf16.msra.mxu0 %v126
    %152 = vmatprep.subr.bf16.mxu0 0
    %153 = vmatpush1.bf16.msra.mxu0 %v125
    %154 = vmatprep.subr.bf16.mxu0 0
    %155 = vmatpush1.bf16.msra.mxu0 %v124
    %156 = vmatprep.subr.bf16.mxu0 0
    %157 = vmatpush2.bf16.msra.mxu0 0
    %158 = vmatprep.subr.bf16.mxu0 0
    %159 = vmatpush2.bf16.msra.mxu0 0
    %160 = vmatprep.subr.bf16.mxu0 0
    %161 = vmatpush2.bf16.msra.mxu0 0
    %162 = vmatprep.subr.bf16.mxu0 0
    %163 = vmatpush2.bf16.msra.mxu0 0
    %164 = vmatprep.subr.bf16.mxu0 0
    %165 = vmatpush2.bf16.msra.mxu0 0
    %166 = vmatprep.subr.bf16.mxu0 0
    %167 = vmatpush2.bf16.msra.mxu0 0
    %168 = vmatprep.subr.bf16.mxu0 0
    %169 = vmatpush2.bf16.msra.mxu0 0
    %170 = vmatprep.subr.bf16.mxu0 0
    %171 = vmatpush2.bf16.msra.mxu0 0
    %172 = vmatprep.mubr.bf16.mxu0 0
    %173 = vmatmul.mubr.bf16.gmra.mxu0 %v68
    %v174 = vpop.f32.mrf.mxu0
    %v175 = vadd.f32 %v90, %v174
    %v176 = vpop.f32.mrf.mxu0
    %v177 = vpop.f32.mrf.mxu0
    %v178 = vpop.f32.mrf.mxu0
    %179 = vdwg.mxu0
    %vm180 = vcmp.gt.f32.partialorder %v175, 0.0
    %v181 = vmul.f32 %v175, 0.2
    %v182 = vsel %vm180, %v175, %v181
    %v183 = vpack.c.bf16 %v182, %v182
    %v184 = vld [vmem:[%s6] sm:$0xf]
    %v185 = vld [vmem:[%s6 + $0x4] sm:$0xf]
    %v186 = vld [vmem:[%s6 + $0x8] sm:$0xf]
    %v187 = vld [vmem:[%s6 + $0xc] sm:$0xf]
    %v188 = vld [vmem:[%s6 + $0x10] sm:$0xf]
    %v189 = vld [vmem:[%s6 + $0x14] sm:$0xf]
    %v190 = vld [vmem:[%s6 + $0x18] sm:$0xf]
    %v191 = vld [vmem:[%s6 + $0x1c] sm:$0xf]
    %v192 = vld [vmem:[%s7] sm:$0x1]
    %v194 = vlaneseq
    %v195 = vshrl.u32 %v194, 7
    %v196 = vsub.s32 0, %v195
    %v197 = vrot.slane %v192, %v196
    %v207 = vunpack.c.l.b16 %v184
    %v208 = vunpack.c.l.b16 %v185
    %v209 = vunpack.c.l.b16 %v186
    %v210 = vunpack.c.l.b16 %v187
    %v211 = vunpack.c.l.b16 %v188
    %v212 = vunpack.c.l.b16 %v189
    %v213 = vunpack.c.l.b16 %v190
    %v214 = vunpack.c.l.b16 %v191
    %v215 = vpack.c.b16 %v208, %v207
    %v216 = vpack.c.b16 %v210, %v209
    %v217 = vpack.c.b16 %v212, %v211
    %v218 = vpack.c.b16 %v214, %v213
    %vm223 = vcmask 523264
    %v225 = vsel %vm223, %v183, 0
    %227 = vmatprep.subr.bf16.mxu0 0
    %228 = vmatpush1.bf16.msra.mxu0 0
    %229 = vmatprep.subr.bf16.mxu0 0
    %230 = vmatpush1.bf16.msra.mxu0 0
    %231 = vmatprep.subr.bf16.mxu0 0
    %232 = vmatpush1.bf16.msra.mxu0 0
    %233 = vmatprep.subr.bf16.mxu0 0
    %234 = vmatpush1.bf16.msra.mxu0 0
    %235 = vmatprep.subr.bf16.mxu0 0
    %236 = vmatpush1.bf16.msra.mxu0 %v218
    %237 = vmatprep.subr.bf16.mxu0 0
    %238 = vmatpush1.bf16.msra.mxu0 %v217
    %239 = vmatprep.subr.bf16.mxu0 0
    %240 = vmatpush1.bf16.msra.mxu0 %v216
    %241 = vmatprep.subr.bf16.mxu0 0
    %242 = vmatpush1.bf16.msra.mxu0 %v215
    %243 = vmatprep.subr.bf16.mxu0 0
    %244 = vmatpush2.bf16.msra.mxu0 0
    %245 = vmatprep.subr.bf16.mxu0 0
    %246 = vmatpush2.bf16.msra.mxu0 0
    %247 = vmatprep.subr.bf16.mxu0 0
    %248 = vmatpush2.bf16.msra.mxu0 0
    %249 = vmatprep.subr.bf16.mxu0 0
    %250 = vmatpush2.bf16.msra.mxu0 0
    %251 = vmatprep.subr.bf16.mxu0 0
    %252 = vmatpush2.bf16.msra.mxu0 0
    %253 = vmatprep.subr.bf16.mxu0 0
    %254 = vmatpush2.bf16.msra.mxu0 0
    %255 = vmatprep.subr.bf16.mxu0 0
    %256 = vmatpush2.bf16.msra.mxu0 0
    %257 = vmatprep.subr.bf16.mxu0 0
    %258 = vmatpush2.bf16.msra.mxu0 0
    %259 = vmatprep.mubr.bf16.mxu0 0
    %260 = vmatmul.mubr.bf16.gmra.mxu0 %v225
    %v261 = vpop.f32.mrf.mxu0
    %v262 = vadd.f32 %v197, %v261
    %v263 = vpop.f32.mrf.mxu0
    %v264 = vpop.f32.mrf.mxu0
    %v265 = vpop.f32.mrf.mxu0
    %266 = vdwg.mxu0
    %vm267 = vcmp.gt.f32.partialorder %v262, 0.0
    %v268 = vmul.f32 %v262, 0.2
    %v269 = vsel %vm267, %v262, %v268
    %v270 = vpack.c.bf16 %v269, %v269
    %v271 = vld [vmem:[%s8] sm:$0xf]
    %v272 = vld [vmem:[%s8 + $0x4] sm:$0xf]
    %v273 = vld [vmem:[%s8 + $0x8] sm:$0xf]
    %v274 = vld [vmem:[%s8 + $0xc] sm:$0xf]
    %v275 = vld [vmem:[%s8 + $0x10] sm:$0xf]
    %v276 = vld [vmem:[%s8 + $0x14] sm:$0xf]
    %v277 = vld [vmem:[%s8 + $0x18] sm:$0xf]
    %v278 = vld [vmem:[%s8 + $0x1c] sm:$0xf]
    %v279 = vld [vmem:[%s9] sm:$0x1]
    %v281 = vlaneseq
    %v282 = vshrl.u32 %v281, 7
    %v283 = vsub.s32 0, %v282
    %v284 = vrot.slane %v279, %v283
    %v294 = vunpack.c.l.b16 %v271
    %v295 = vunpack.c.l.b16 %v272
    %v296 = vunpack.c.l.b16 %v273
    %v297 = vunpack.c.l.b16 %v274
    %v298 = vunpack.c.l.b16 %v275
    %v299 = vunpack.c.l.b16 %v276
    %v300 = vunpack.c.l.b16 %v277
    %v301 = vunpack.c.l.b16 %v278
    %v302 = vpack.c.b16 %v295, %v294
    %v303 = vpack.c.b16 %v297, %v296
    %v304 = vpack.c.b16 %v299, %v298
    %v305 = vpack.c.b16 %v301, %v300
    %v311 = vsel %vm223, %v270, 0
    %313 = vmatprep.subr.bf16.mxu0 0
    %314 = vmatpush1.bf16.msra.mxu0 0
    %315 = vmatprep.subr.bf16.mxu0 0
    %316 = vmatpush1.bf16.msra.mxu0 0
    %317 = vmatprep.subr.bf16.mxu0 0
    %318 = vmatpush1.bf16.msra.mxu0 0
    %319 = vmatprep.subr.bf16.mxu0 0
    %320 = vmatpush1.bf16.msra.mxu0 0
    %321 = vmatprep.subr.bf16.mxu0 0
    %322 = vmatpush1.bf16.msra.mxu0 %v305
    %323 = vmatprep.subr.bf16.mxu0 0
    %324 = vmatpush1.bf16.msra.mxu0 %v304
    %325 = vmatprep.subr.bf16.mxu0 0
    %326 = vmatpush1.bf16.msra.mxu0 %v303
    %327 = vmatprep.subr.bf16.mxu0 0
    %328 = vmatpush1.bf16.msra.mxu0 %v302
    %329 = vmatprep.subr.bf16.mxu0 0
    %330 = vmatpush2.bf16.msra.mxu0 0
    %331 = vmatprep.subr.bf16.mxu0 0
    %332 = vmatpush2.bf16.msra.mxu0 0
    %333 = vmatprep.subr.bf16.mxu0 0
    %334 = vmatpush2.bf16.msra.mxu0 0
    %335 = vmatprep.subr.bf16.mxu0 0
    %336 = vmatpush2.bf16.msra.mxu0 0
    %337 = vmatprep.subr.bf16.mxu0 0
    %338 = vmatpush2.bf16.msra.mxu0 0
    %339 = vmatprep.subr.bf16.mxu0 0
    %340 = vmatpush2.bf16.msra.mxu0 0
    %341 = vmatprep.subr.bf16.mxu0 0
    %342 = vmatpush2.bf16.msra.mxu0 0
    %343 = vmatprep.subr.bf16.mxu0 0
    %344 = vmatpush2.bf16.msra.mxu0 0
    %345 = vmatprep.mubr.bf16.mxu0 0
    %346 = vmatmul.mubr.bf16.gmra.mxu0 %v311
    %v347 = vpop.f32.mrf.mxu0
    %v348 = vadd.f32 %v284, %v347
    %v349 = vpop.f32.mrf.mxu0
    %v350 = vpop.f32.mrf.mxu0
    %v351 = vpop.f32.mrf.mxu0
    %352 = vdwg.mxu0
    %vm353 = vcmask 60416
    %v354 = vsel %vm353, %v348, -inf
    %355 = vmax.xlane.f32.xlu0 %v354
    %v356 = vpop.xlane.xlu0 %355
    %v357 = vsub.f32 %v348, %v356
    %v358 = vmul.f32 %v357, 1.442695
    %v359 = vpow.pop %v358
    %v360 = vsel %vm353, %v359, 0.0
    %361 = vadd.xlane.f32.xlu0 %v360
    %v362 = vpop.xlane.xlu0 %361
    %v363 = vrcp.pop %v362
    %v364 = vmul.f32 %v359, %v363
    %v365 = vld [vmem:[%s2] sm:$0xf]
    %v366 = vadd.f32 %v365, 1e-20
    %v367 = vlog2.pop %v366
    %v368 = vmul.f32 %v367, 0.6931472
    %v369 = vsub.f32 0.0, %v368
    %v370 = vadd.f32 %v369, 1e-20
    %v371 = vlog2.pop %v370
    %v372 = vmul.f32 %v371, 0.6931472
    %v373 = vsub.f32 0.0, %v372
    %v374 = vadd.f32 %v348, %v373
    %v375 = vsel %vm353, %v374, -inf
    %376 = vmax.xlane.f32.xlu0 %v375
    %v377 = vpop.xlane.xlu0 %376
    %v378 = vsub.f32 %v374, %v377
    %v379 = vmul.f32 %v378, 1.442695
    %v380 = vpow.pop %v379
    %v381 = vsel %vm353, %v380, 0.0
    %382 = vadd.xlane.f32.xlu0 %v381
    %v383 = vpop.xlane.xlu0 %382
    %v384 = vrcp.pop %v383
    %v385 = vmul.f32 %v380, %v384
    %387 = vrot.lane.b32.xlu0 %v364, 8
    %v388 = vpop.permute.xlu0 %387
    %391 = vrot.lane.b32.xlu0 %v385, 16
    %v392 = vpop.permute.xlu0 %391
    %vm394 = vcmask 64512
    %v395 = vsel %vm394, %v348, %v388
    %vm396 = vcmask 130048
    %v397 = vsel %vm396, %v395, %v392
    %vm398 = vcmask 195584
    %v399 = vsel %vm398, %v397, 0.0
    %400 = vst [vmem:[#allocation2] sm:$0xf] %v399
    %v401 = vld [vmem:[%s1] sm:$0xff]
    %v402 = vld [vmem:[%s1 + $0x8] sm:$0xff]
    %v403 = vld [vmem:[%s1 + $0x10] sm:$0xff]
    %v404 = vld [vmem:[%s1 + $0x18] sm:$0xff]
    %v405 = vpack.c.bf16 %v402, %v401
    %v406 = vpack.c.bf16 %v404, %v403
    %v407 = vld [vmem:[%s10] sm:$0xf]
    %v408 = vld [vmem:[%s10 + $0x4] sm:$0xf]
    %v409 = vpack.c.bf16 %v385, %v385
    %v410 = vld [vmem:[%s11] sm:$0xf]
    %v412 = vsel %vm394, %v409, 0
    %vm414 = vcmask 1043456
    %v416 = vsel %vm414, %v410, 0
    %418 = vmatprep.subr.bf16.mxu0 0
    %419 = vmatpush1.bf16.msra.mxu0 0
    %420 = vmatprep.subr.bf16.mxu0 0
    %421 = vmatpush1.bf16.msra.mxu0 0
    %422 = vmatprep.subr.bf16.mxu0 0
    %423 = vmatpush1.bf16.msra.mxu0 0
    %424 = vmatprep.subr.bf16.mxu0 0
    %425 = vmatpush1.bf16.msra.mxu0 0
    %426 = vmatprep.subr.bf16.mxu0 0
    %427 = vmatpush1.bf16.msra.mxu0 0
    %428 = vmatprep.subr.bf16.mxu0 0
    %429 = vmatpush1.bf16.msra.mxu0 0
    %430 = vmatprep.subr.bf16.mxu0 0
    %431 = vmatpush1.bf16.msra.mxu0 0
    %432 = vmatprep.subr.bf16.mxu0 0
    %433 = vmatpush1.bf16.msra.mxu0 %v416
    %434 = vmatprep.subr.bf16.mxu0 0
    %435 = vmatpush2.bf16.msra.mxu0 0
    %436 = vmatprep.subr.bf16.mxu0 0
    %437 = vmatpush2.bf16.msra.mxu0 0
    %438 = vmatprep.subr.bf16.mxu0 0
    %439 = vmatpush2.bf16.msra.mxu0 0
    %440 = vmatprep.subr.bf16.mxu0 0
    %441 = vmatpush2.bf16.msra.mxu0 0
    %442 = vmatprep.subr.bf16.mxu0 0
    %443 = vmatpush2.bf16.msra.mxu0 0
    %444 = vmatprep.subr.bf16.mxu0 0
    %445 = vmatpush2.bf16.msra.mxu0 0
    %446 = vmatprep.subr.bf16.mxu0 0
    %447 = vmatpush2.bf16.msra.mxu0 0
    %448 = vmatprep.subr.bf16.mxu0 0
    %449 = vmatpush2.bf16.msra.mxu0 0
    %450 = vmatprep.mubr.bf16.mxu0 0
    %451 = vmatmul.mubr.bf16.gmra.mxu0 %v412
    %v452 = vpop.f32.mrf.mxu0
    %v453 = vadd.f32 0.0, %v452
    %v454 = vpop.f32.mrf.mxu0
    %v455 = vpop.f32.mrf.mxu0
    %v456 = vpop.f32.mrf.mxu0
    %457 = vdwg.mxu0
    %v460 = vunpack.c.l.s4 1966171168
    %v461 = vunpack.c.0.s8 %v460
    %v462 = vlaneseq
    %v463 = vshrl.u32 %v462, 7
    %v464 = vsub.s32 %v461, %v463
    %v465 = vrot.slane %v453, %v464
    %v466 = vcombine.high %v465, %v465
    %v468 = vunpack.c.l.s4 1966171168
    %v469 = vunpack.c.0.s8 %v468
    %v470 = vlaneseq
    %v471 = vshrl.u32 %v470, 7
    %v472 = vsub.s32 %v469, %v471
    %v473 = vrot.slane %v465, %v472
    %v475 = vunpack.c.l.s4 1966171168
    %v476 = vunpack.c.0.s8 %v475
    %v477 = vlaneseq
    %v478 = vshrl.u32 %v477, 7
    %v479 = vsub.s32 %v476, %v478
    %v480 = vrot.slane %v466, %v479
    %v481 = vcombine.high %v473, %v473
    %v482 = vcombine.high %v480, %v480
    %v483 = vlaneseq
    %v484 = vshrl.u32 %v483, 7
    %v485 = vsub.s32 0, %v484
    %v486 = vrot.slane %v473, %v485
    %v487 = vlaneseq
    %v488 = vshrl.u32 %v487, 7
    %v489 = vsub.s32 0, %v488
    %v490 = vrot.slane %v480, %v489
    %v491 = vlaneseq
    %v492 = vshrl.u32 %v491, 7
    %v493 = vsub.s32 0, %v492
    %v494 = vrot.slane %v481, %v493
    %v495 = vlaneseq
    %v496 = vshrl.u32 %v495, 7
    %v497 = vsub.s32 0, %v496
    %v498 = vrot.slane %v482, %v497
    %v505 = vunpack.c.l.b16 %v407
    %v506 = vunpack.c.l.b16 %v408
    %v507 = vpack.c.b16 %v506, %v505
    %v510 = vsel %vm396, %v405, 0
    %v513 = vsel %vm396, %v406, 0
    %515 = vmatprep.subr.bf16.mxu0 0
    %516 = vmatpush1.bf16.msra.mxu0 0
    %517 = vmatprep.subr.bf16.mxu0 0
    %518 = vmatpush1.bf16.msra.mxu0 0
    %519 = vmatprep.subr.bf16.mxu0 0
    %520 = vmatpush1.bf16.msra.mxu0 0
    %521 = vmatprep.subr.bf16.mxu0 0
    %522 = vmatpush1.bf16.msra.mxu0 0
    %523 = vmatprep.subr.bf16.mxu0 0
    %524 = vmatpush1.bf16.msra.mxu0 0
    %525 = vmatprep.subr.bf16.mxu0 0
    %526 = vmatpush1.bf16.msra.mxu0 0
    %527 = vmatprep.subr.bf16.mxu0 0
    %528 = vmatpush1.bf16.msra.mxu0 0
    %529 = vmatprep.subr.bf16.mxu0 0
    %530 = vmatpush1.bf16.msra.mxu0 %v507
    %531 = vmatprep.subr.bf16.mxu0 0
    %532 = vmatpush2.bf16.msra.mxu0 0
    %533 = vmatprep.subr.bf16.mxu0 0
    %534 = vmatpush2.bf16.msra.mxu0 0
    %535 = vmatprep.subr.bf16.mxu0 0
    %536 = vmatpush2.bf16.msra.mxu0 0
    %537 = vmatprep.subr.bf16.mxu0 0
    %538 = vmatpush2.bf16.msra.mxu0 0
    %539 = vmatprep.subr.bf16.mxu0 0
    %540 = vmatpush2.bf16.msra.mxu0 0
    %541 = vmatprep.subr.bf16.mxu0 0
    %542 = vmatpush2.bf16.msra.mxu0 0
    %543 = vmatprep.subr.bf16.mxu0 0
    %544 = vmatpush2.bf16.msra.mxu0 0
    %545 = vmatprep.subr.bf16.mxu0 0
    %546 = vmatpush2.bf16.msra.mxu0 0
    %547 = vmatprep.mubr.bf16.mxu0 0
    %548 = vmatmul.mubr.bf16.gmra.mxu0 %v510
    %v549 = vpop.f32.mrf.mxu0
    %v550 = vadd.f32 %v486, %v549
    %v551 = vpop.f32.mrf.mxu0
    %v552 = vpop.f32.mrf.mxu0
    %v553 = vadd.f32 %v490, %v552
    %v554 = vpop.f32.mrf.mxu0
    %555 = vmatprep.mubr.bf16.mxu0 0
    %556 = vmatmul.mubr.bf16.gmra.mxu0 %v513
    %v557 = vpop.f32.mrf.mxu0
    %v558 = vadd.f32 %v494, %v557
    %v559 = vpop.f32.mrf.mxu0
    %v560 = vpop.f32.mrf.mxu0
    %v561 = vadd.f32 %v498, %v560
    %v562 = vpop.f32.mrf.mxu0
    %563 = vdwg.mxu0
    %v564 = vld [vmem:[%s12] sm:$0x1]
    %v566 = vlaneseq
    %v567 = vshrl.u32 %v566, 7
    %v568 = vsub.s32 0, %v567
    %v569 = vrot.slane %v564, %v568
    %v571 = vadd.f32 %v550, %v569
    %v572 = vadd.f32 %v553, %v569
    %v573 = vadd.f32 %v558, %v569
    %v574 = vadd.f32 %v561, %v569
    %v575 = vmax.f32 %v571, 0.0
    %v576 = vmax.f32 %v572, 0.0
    %v577 = vmax.f32 %v573, 0.0
    %v578 = vmax.f32 %v574, 0.0
    %v579 = vpack.c.bf16 %v576, %v575
    %v580 = vpack.c.bf16 %v578, %v577
    %v581 = vld [vmem:[%s13] sm:$0xf]
    %v582 = vld [vmem:[%s13 + $0x4] sm:$0xf]
    %v583 = vld [vmem:[%s13 + $0x8] sm:$0xf]
    %v584 = vld [vmem:[%s13 + $0xc] sm:$0xf]
    %v585 = vld [vmem:[%s13 + $0x10] sm:$0xf]
    %v586 = vld [vmem:[%s13 + $0x14] sm:$0xf]
    %v587 = vld [vmem:[%s13 + $0x18] sm:$0xf]
    %v588 = vld [vmem:[%s13 + $0x1c] sm:$0xf]
    %v589 = vld [vmem:[%s14] sm:$0x1]
    %v591 = vlaneseq
    %v592 = vshrl.u32 %v591, 7
    %v593 = vsub.s32 0, %v592
    %v594 = vrot.slane %v589, %v593
    %v604 = vunpack.c.l.b16 %v581
    %v605 = vunpack.c.l.b16 %v582
    %v606 = vunpack.c.l.b16 %v583
    %v607 = vunpack.c.l.b16 %v584
    %v608 = vunpack.c.l.b16 %v585
    %v609 = vunpack.c.l.b16 %v586
    %v610 = vunpack.c.l.b16 %v587
    %v611 = vunpack.c.l.b16 %v588
    %v612 = vpack.c.b16 %v605, %v604
    %v613 = vpack.c.b16 %v607, %v606
    %v614 = vpack.c.b16 %v609, %v608
    %v615 = vpack.c.b16 %v611, %v610
    %v621 = vsel %vm223, %v579, 0
    %v624 = vsel %vm223, %v580, 0
    %626 = vmatprep.subr.bf16.mxu0 0
    %627 = vmatpush1.bf16.msra.mxu0 0
    %628 = vmatprep.subr.bf16.mxu0 0
    %629 = vmatpush1.bf16.msra.mxu0 0
    %630 = vmatprep.subr.bf16.mxu0 0
    %631 = vmatpush1.bf16.msra.mxu0 0
    %632 = vmatprep.subr.bf16.mxu0 0
    %633 = vmatpush1.bf16.msra.mxu0 0
    %634 = vmatprep.subr.bf16.mxu0 0
    %635 = vmatpush1.bf16.msra.mxu0 %v615
    %636 = vmatprep.subr.bf16.mxu0 0
    %637 = vmatpush1.bf16.msra.mxu0 %v614
    %638 = vmatprep.subr.bf16.mxu0 0
    %639 = vmatpush1.bf16.msra.mxu0 %v613
    %640 = vmatprep.subr.bf16.mxu0 0
    %641 = vmatpush1.bf16.msra.mxu0 %v612
    %642 = vmatprep.subr.bf16.mxu0 0
    %643 = vmatpush2.bf16.msra.mxu0 0
    %644 = vmatprep.subr.bf16.mxu0 0
    %645 = vmatpush2.bf16.msra.mxu0 0
    %646 = vmatprep.subr.bf16.mxu0 0
    %647 = vmatpush2.bf16.msra.mxu0 0
    %648 = vmatprep.subr.bf16.mxu0 0
    %649 = vmatpush2.bf16.msra.mxu0 0
    %650 = vmatprep.subr.bf16.mxu0 0
    %651 = vmatpush2.bf16.msra.mxu0 0
    %652 = vmatprep.subr.bf16.mxu0 0
    %653 = vmatpush2.bf16.msra.mxu0 0
    %654 = vmatprep.subr.bf16.mxu0 0
    %655 = vmatpush2.bf16.msra.mxu0 0
    %656 = vmatprep.subr.bf16.mxu0 0
    %657 = vmatpush2.bf16.msra.mxu0 0
    %658 = vmatprep.mubr.bf16.mxu0 0
    %659 = vmatmul.mubr.bf16.gmra.mxu0 %v621
    %v660 = vpop.f32.mrf.mxu0
    %v661 = vadd.f32 %v594, %v660
    %v662 = vpop.f32.mrf.mxu0
    %v663 = vpop.f32.mrf.mxu0
    %v664 = vadd.f32 %v594, %v663
    %v665 = vpop.f32.mrf.mxu0
    %666 = vmatprep.mubr.bf16.mxu0 0
    %667 = vmatmul.mubr.bf16.gmra.mxu0 %v624
    %v668 = vpop.f32.mrf.mxu0
    %v669 = vadd.f32 %v594, %v668
    %v670 = vpop.f32.mrf.mxu0
    %v671 = vpop.f32.mrf.mxu0
    %v672 = vadd.f32 %v594, %v671
    %v673 = vpop.f32.mrf.mxu0
    %674 = vdwg.mxu0
    %v675 = vmax.f32 %v661, 0.0
    %v676 = vmax.f32 %v664, 0.0
    %v677 = vmax.f32 %v669, 0.0
    %v678 = vmax.f32 %v672, 0.0
    %v679 = vpack.c.bf16 %v676, %v675
    %v680 = vpack.c.bf16 %v678, %v677
    %v681 = vld [vmem:[%s15] sm:$0xf]
    %v682 = vld [vmem:[%s15 + $0x4] sm:$0xf]
    %v683 = vld [vmem:[%s16] sm:$0x1]
    %v685 = vlaneseq
    %v686 = vshrl.u32 %v685, 7
    %v687 = vsub.s32 0, %v686
    %v688 = vrot.slane %v683, %v687
    %v692 = vunpack.c.l.b16 %v681
    %v693 = vunpack.c.l.b16 %v682
    %v694 = vpack.c.b16 %v693, %v692
    %v697 = vsel %vm396, %v679, 0
    %v700 = vsel %vm396, %v680, 0
    %702 = vmatprep.subr.bf16.mxu0 0
    %703 = vmatpush1.bf16.msra.mxu0 0
    %704 = vmatprep.subr.bf16.mxu0 0
    %705 = vmatpush1.bf16.msra.mxu0 0
    %706 = vmatprep.subr.bf16.mxu0 0
    %707 = vmatpush1.bf16.msra.mxu0 0
    %708 = vmatprep.subr.bf16.mxu0 0
    %709 = vmatpush1.bf16.msra.mxu0 0
    %710 = vmatprep.subr.bf16.mxu0 0
    %711 = vmatpush1.bf16.msra.mxu0 0
    %712 = vmatprep.subr.bf16.mxu0 0
    %713 = vmatpush1.bf16.msra.mxu0 0
    %714 = vmatprep.subr.bf16.mxu0 0
    %715 = vmatpush1.bf16.msra.mxu0 0
    %716 = vmatprep.subr.bf16.mxu0 0
    %717 = vmatpush1.bf16.msra.mxu0 %v694
    %718 = vmatprep.subr.bf16.mxu0 0
    %719 = vmatpush2.bf16.msra.mxu0 0
    %720 = vmatprep.subr.bf16.mxu0 0
    %721 = vmatpush2.bf16.msra.mxu0 0
    %722 = vmatprep.subr.bf16.mxu0 0
    %723 = vmatpush2.bf16.msra.mxu0 0
    %724 = vmatprep.subr.bf16.mxu0 0
    %725 = vmatpush2.bf16.msra.mxu0 0
    %726 = vmatprep.subr.bf16.mxu0 0
    %727 = vmatpush2.bf16.msra.mxu0 0
    %728 = vmatprep.subr.bf16.mxu0 0
    %729 = vmatpush2.bf16.msra.mxu0 0
    %730 = vmatprep.subr.bf16.mxu0 0
    %731 = vmatpush2.bf16.msra.mxu0 0
    %732 = vmatprep.subr.bf16.mxu0 0
    %733 = vmatpush2.bf16.msra.mxu0 0
    %734 = vmatprep.mubr.bf16.mxu0 0
    %735 = vmatmul.mubr.bf16.gmra.mxu0 %v697
    %v736 = vpop.f32.mrf.mxu0
    %v737 = vadd.f32 %v688, %v736
    %v738 = vpop.f32.mrf.mxu0
    %v739 = vpop.f32.mrf.mxu0
    %v740 = vadd.f32 %v688, %v739
    %v741 = vpop.f32.mrf.mxu0
    %742 = vmatprep.mubr.bf16.mxu0 0
    %743 = vmatmul.mubr.bf16.gmra.mxu0 %v700
    %v744 = vpop.f32.mrf.mxu0
    %v745 = vadd.f32 %v688, %v744
    %v746 = vpop.f32.mrf.mxu0
    %v747 = vpop.f32.mrf.mxu0
    %v748 = vadd.f32 %v688, %v747
    %v749 = vpop.f32.mrf.mxu0
    %750 = vdwg.mxu0
    %v751 = vmax.f32 %v737, 0.0
    %v752 = vmax.f32 %v740, 0.0
    %v753 = vmax.f32 %v745, 0.0
    %v754 = vmax.f32 %v748, 0.0
    %v755 = vand.u32 2147483647, %v737
    %v756 = vand.u32 2147483647, %v740
    %v757 = vand.u32 2147483647, %v745
    %v758 = vand.u32 2147483647, %v748
    %v759 = vsub.f32 0.0, %v755
    %v760 = vsub.f32 0.0, %v756
    %v761 = vsub.f32 0.0, %v757
    %v762 = vsub.f32 0.0, %v758
    %v763 = vmul.f32 %v759, 1.442695
    %v764 = vpow.pop %v763
    %v765 = vmul.f32 %v760, 1.442695
    %v766 = vpow.pop %v765
    %v767 = vmul.f32 %v761, 1.442695
    %v768 = vpow.pop %v767
    %v769 = vmul.f32 %v762, 1.442695
    %v770 = vpow.pop %v769
    %v771 = vadd.f32 %v764, 1.0
    %v772 = vlog2.pop %v771
    %v773 = vmul.f32 %v772, 0.6931472
    %v774 = vmul.f32 -0.5, %v764
    %v775 = vadd.f32 %v774, 1.0
    %v776 = vmul.f32 %v775, %v764
    %v777 = vand.u32 2147483647, %v764
    %vm778 = vcmp.lt.f32.partialorder %v777, 0.0004427343
    %v779 = vsel %vm778, %v776, %v773
    %v780 = vadd.f32 %v766, 1.0
    %v781 = vlog2.pop %v780
    %v782 = vmul.f32 %v781, 0.6931472
    %v783 = vmul.f32 -0.5, %v766
    %v784 = vadd.f32 %v783, 1.0
    %v785 = vmul.f32 %v784, %v766
    %v786 = vand.u32 2147483647, %v766
    %vm787 = vcmp.lt.f32.partialorder %v786, 0.0004427343
    %v788 = vsel %vm787, %v785, %v782
    %v789 = vadd.f32 %v768, 1.0
    %v790 = vlog2.pop %v789
    %v791 = vmul.f32 %v790, 0.6931472
    %v792 = vmul.f32 -0.5, %v768
    %v793 = vadd.f32 %v792, 1.0
    %v794 = vmul.f32 %v793, %v768
    %v795 = vand.u32 2147483647, %v768
    %vm796 = vcmp.lt.f32.partialorder %v795, 0.0004427343
    %v797 = vsel %vm796, %v794, %v791
    %v798 = vadd.f32 %v770, 1.0
    %v799 = vlog2.pop %v798
    %v800 = vmul.f32 %v799, 0.6931472
    %v801 = vmul.f32 -0.5, %v770
    %v802 = vadd.f32 %v801, 1.0
    %v803 = vmul.f32 %v802, %v770
    %v804 = vand.u32 2147483647, %v770
    %vm805 = vcmp.lt.f32.partialorder %v804, 0.0004427343
    %v806 = vsel %vm805, %v803, %v800
    %v807 = vadd.f32 %v751, %v779
    %v808 = vadd.f32 %v752, %v788
    %v809 = vadd.f32 %v753, %v797
    %v810 = vadd.f32 %v754, %v806
    %v811 = vld [vmem:[%s3] sm:$0xff]
    %v812 = vld [vmem:[%s3 + $0x8] sm:$0xff]
    %v813 = vld [vmem:[%s3 + $0x10] sm:$0xff]
    %v814 = vld [vmem:[%s3 + $0x18] sm:$0xff]
    %v815 = vadd.f32 %v807, 1e-10
    %v816 = vadd.f32 %v808, 1e-10
    %v817 = vadd.f32 %v809, 1e-10
    %v818 = vadd.f32 %v810, 1e-10
    %v819 = vrsqrt.pop %v815
    %v820 = vmul.f32 %v815, %v819
    %vm821 = vcmp.eq.f32.partialorder %v815, inf
    %v822 = vsel %vm821, %v815, %v820
    %vm823 = vcmp.eq.f32.partialorder %v815, 0.0
    %v824 = vand.u32 %v815, 2147483648
    %v825 = vsel %vm823, %v824, %v822
    %v826 = vrsqrt.pop %v816
    %v827 = vmul.f32 %v816, %v826
    %vm828 = vcmp.eq.f32.partialorder %v816, inf
    %v829 = vsel %vm828, %v816, %v827
    %vm830 = vcmp.eq.f32.partialorder %v816, 0.0
    %v831 = vand.u32 %v816, 2147483648
    %v832 = vsel %vm830, %v831, %v829
    %v833 = vrsqrt.pop %v817
    %v834 = vmul.f32 %v817, %v833
    %vm835 = vcmp.eq.f32.partialorder %v817, inf
    %v836 = vsel %vm835, %v817, %v834
    %vm837 = vcmp.eq.f32.partialorder %v817, 0.0
    %v838 = vand.u32 %v817, 2147483648
    %v839 = vsel %vm837, %v838, %v836
    %v840 = vrsqrt.pop %v818
    %v841 = vmul.f32 %v818, %v840
    %vm842 = vcmp.eq.f32.partialorder %v818, inf
    %v843 = vsel %vm842, %v818, %v841
    %vm844 = vcmp.eq.f32.partialorder %v818, 0.0
    %v845 = vand.u32 %v818, 2147483648
    %v846 = vsel %vm844, %v845, %v843
    %851 = vrot.lane.b32.xlu0 %v825, 120
    %v852 = vpop.permute.xlu0 %851
    %853 = vrot.lane.b32.xlu0 %v832, 120
    %v854 = vpop.permute.xlu0 %853
    %855 = vrot.lane.b32.xlu0 %v839, 120
    %v856 = vpop.permute.xlu0 %855
    %857 = vrot.lane.b32.xlu0 %v846, 120
    %v858 = vpop.permute.xlu0 %857
    %v863 = vmul.f32 %v811, %v852
    %v864 = vmul.f32 %v812, %v854
    %v865 = vmul.f32 %v813, %v856
    %v866 = vmul.f32 %v814, %v858
    %v867 = vadd.f32 %v737, %v863
    %v868 = vadd.f32 %v740, %v864
    %v869 = vadd.f32 %v745, %v865
    %v870 = vadd.f32 %v748, %v866
    %v871 = vpack.c.bf16 %v868, %v867
    %v872 = vpack.c.bf16 %v870, %v869
    %v873 = vld [vmem:[%s17] sm:$0xf]
    %v874 = vld [vmem:[%s18] sm:$0x1]
    %v876 = vlaneseq
    %v877 = vshrl.u32 %v876, 7
    %v878 = vsub.s32 0, %v877
    %v879 = vrot.slane %v874, %v878
    %v882 = vsel %vm394, %v871, 0
    %v885 = vsel %vm394, %v872, 0
    %v888 = vsel %vm414, %v873, 0
    %890 = vmatprep.subr.bf16.mxu0 0
    %891 = vmatpush1.bf16.msra.mxu0 0
    %892 = vmatprep.subr.bf16.mxu0 0
    %893 = vmatpush1.bf16.msra.mxu0 0
    %894 = vmatprep.subr.bf16.mxu0 0
    %895 = vmatpush1.bf16.msra.mxu0 0
    %896 = vmatprep.subr.bf16.mxu0 0
    %897 = vmatpush1.bf16.msra.mxu0 0
    %898 = vmatprep.subr.bf16.mxu0 0
    %899 = vmatpush1.bf16.msra.mxu0 0
    %900 = vmatprep.subr.bf16.mxu0 0
    %901 = vmatpush1.bf16.msra.mxu0 0
    %902 = vmatprep.subr.bf16.mxu0 0
    %903 = vmatpush1.bf16.msra.mxu0 0
    %904 = vmatprep.subr.bf16.mxu0 0
    %905 = vmatpush1.bf16.msra.mxu0 %v888
    %906 = vmatprep.subr.bf16.mxu0 0
    %907 = vmatpush2.bf16.msra.mxu0 0
    %908 = vmatprep.subr.bf16.mxu0 0
    %909 = vmatpush2.bf16.msra.mxu0 0
    %910 = vmatprep.subr.bf16.mxu0 0
    %911 = vmatpush2.bf16.msra.mxu0 0
    %912 = vmatprep.subr.bf16.mxu0 0
    %913 = vmatpush2.bf16.msra.mxu0 0
    %914 = vmatprep.subr.bf16.mxu0 0
    %915 = vmatpush2.bf16.msra.mxu0 0
    %916 = vmatprep.subr.bf16.mxu0 0
    %917 = vmatpush2.bf16.msra.mxu0 0
    %918 = vmatprep.subr.bf16.mxu0 0
    %919 = vmatpush2.bf16.msra.mxu0 0
    %920 = vmatprep.subr.bf16.mxu0 0
    %921 = vmatpush2.bf16.msra.mxu0 0
    %922 = vmatprep.mubr.bf16.mxu0 0
    %923 = vmatmul.mubr.bf16.gmra.mxu0 %v882
    %v924 = vpop.f32.mrf.mxu0
    %v925 = vadd.f32 %v879, %v924
    %v926 = vpop.f32.mrf.mxu0
    %v927 = vpop.f32.mrf.mxu0
    %v928 = vadd.f32 %v879, %v927
    %v929 = vpop.f32.mrf.mxu0
    %930 = vmatprep.mubr.bf16.mxu0 0
    %931 = vmatmul.mubr.bf16.gmra.mxu0 %v885
    %v932 = vpop.f32.mrf.mxu0
    %v933 = vadd.f32 %v879, %v932
    %v934 = vpop.f32.mrf.mxu0
    %v935 = vpop.f32.mrf.mxu0
    %v936 = vadd.f32 %v879, %v935
    %v937 = vpop.f32.mrf.mxu0
    %938 = vdwg.mxu0
    %v939 = vmax.f32 %v925, 0.0
    %v940 = vmax.f32 %v928, 0.0
    %v941 = vmax.f32 %v933, 0.0
    %v942 = vmax.f32 %v936, 0.0
    %v943 = vand.u32 2147483647, %v925
    %v944 = vand.u32 2147483647, %v928
    %v945 = vand.u32 2147483647, %v933
    %v946 = vand.u32 2147483647, %v936
    %v947 = vsub.f32 0.0, %v943
    %v948 = vsub.f32 0.0, %v944
    %v949 = vsub.f32 0.0, %v945
    %v950 = vsub.f32 0.0, %v946
    %v951 = vmul.f32 %v947, 1.442695
    %v952 = vpow.pop %v951
    %v953 = vmul.f32 %v948, 1.442695
    %v954 = vpow.pop %v953
    %v955 = vmul.f32 %v949, 1.442695
    %v956 = vpow.pop %v955
    %v957 = vmul.f32 %v950, 1.442695
    %v958 = vpow.pop %v957
    %v959 = vadd.f32 %v952, 1.0
    %v960 = vlog2.pop %v959
    %v961 = vmul.f32 %v960, 0.6931472
    %v962 = vmul.f32 -0.5, %v952
    %v963 = vadd.f32 %v962, 1.0
    %v964 = vmul.f32 %v963, %v952
    %v965 = vand.u32 2147483647, %v952
    %vm966 = vcmp.lt.f32.partialorder %v965, 0.0004427343
    %v967 = vsel %vm966, %v964, %v961
    %v968 = vadd.f32 %v954, 1.0
    %v969 = vlog2.pop %v968
    %v970 = vmul.f32 %v969, 0.6931472
    %v971 = vmul.f32 -0.5, %v954
    %v972 = vadd.f32 %v971, 1.0
    %v973 = vmul.f32 %v972, %v954
    %v974 = vand.u32 2147483647, %v954
    %vm975 = vcmp.lt.f32.partialorder %v974, 0.0004427343
    %v976 = vsel %vm975, %v973, %v970
    %v977 = vadd.f32 %v956, 1.0
    %v978 = vlog2.pop %v977
    %v979 = vmul.f32 %v978, 0.6931472
    %v980 = vmul.f32 -0.5, %v956
    %v981 = vadd.f32 %v980, 1.0
    %v982 = vmul.f32 %v981, %v956
    %v983 = vand.u32 2147483647, %v956
    %vm984 = vcmp.lt.f32.partialorder %v983, 0.0004427343
    %v985 = vsel %vm984, %v982, %v979
    %v986 = vadd.f32 %v958, 1.0
    %v987 = vlog2.pop %v986
    %v988 = vmul.f32 %v987, 0.6931472
    %v989 = vmul.f32 -0.5, %v958
    %v990 = vadd.f32 %v989, 1.0
    %v991 = vmul.f32 %v990, %v958
    %v992 = vand.u32 2147483647, %v958
    %vm993 = vcmp.lt.f32.partialorder %v992, 0.0004427343
    %v994 = vsel %vm993, %v991, %v988
    %v995 = vadd.f32 %v939, %v967
    %v996 = vadd.f32 %v940, %v976
    %v997 = vadd.f32 %v941, %v985
    %v998 = vadd.f32 %v942, %v994
    %1003 = vrot.lane.b32.xlu0 %v867, 16
    %v1004 = vpop.permute.xlu0 %1003
    %1005 = vrot.lane.b32.xlu0 %v868, 16
    %v1006 = vpop.permute.xlu0 %1005
    %1007 = vrot.lane.b32.xlu0 %v869, 16
    %v1008 = vpop.permute.xlu0 %1007
    %1009 = vrot.lane.b32.xlu0 %v870, 16
    %v1010 = vpop.permute.xlu0 %1009
    %1019 = vrot.lane.b32.xlu0 %v925, 24
    %v1020 = vpop.permute.xlu0 %1019
    %1021 = vrot.lane.b32.xlu0 %v928, 24
    %v1022 = vpop.permute.xlu0 %1021
    %1023 = vrot.lane.b32.xlu0 %v933, 24
    %v1024 = vpop.permute.xlu0 %1023
    %1025 = vrot.lane.b32.xlu0 %v936, 24
    %v1026 = vpop.permute.xlu0 %1025
    %1035 = vrot.lane.b32.xlu0 %v995, 24
    %v1036 = vpop.permute.xlu0 %1035
    %1037 = vrot.lane.b32.xlu0 %v996, 24
    %v1038 = vpop.permute.xlu0 %1037
    %1039 = vrot.lane.b32.xlu0 %v997, 24
    %v1040 = vpop.permute.xlu0 %1039
    %1041 = vrot.lane.b32.xlu0 %v998, 24
    %v1042 = vpop.permute.xlu0 %1041
    %v1047 = vsel %vm394, %v737, %v807
    %v1048 = vsel %vm394, %v740, %v808
    %v1049 = vsel %vm394, %v745, %v809
    %v1050 = vsel %vm394, %v748, %v810
    %v1051 = vsel %vm396, %v1047, %v1004
    %v1052 = vsel %vm396, %v1048, %v1006
    %v1053 = vsel %vm396, %v1049, %v1008
    %v1054 = vsel %vm396, %v1050, %v1010
    %v1055 = vsel %vm398, %v1051, %v1020
    %v1056 = vsel %vm398, %v1052, %v1022
    %v1057 = vsel %vm398, %v1053, %v1024
    %v1058 = vsel %vm398, %v1054, %v1026
    %vm1059 = vcmask 261120
    %v1060 = vsel %vm1059, %v1055, %v1036
    %v1061 = vsel %vm1059, %v1056, %v1038
    %v1062 = vsel %vm1059, %v1057, %v1040
    %v1063 = vsel %vm1059, %v1058, %v1042
    %vm1064 = vcmask 326656
    %v1065 = vsel %vm1064, %v1060, 0.0
    %v1066 = vsel %vm1064, %v1061, 0.0
    %v1067 = vsel %vm1064, %v1062, 0.0
    %v1068 = vsel %vm1064, %v1063, 0.0
    %1069 = vst [vmem:[#allocation4] sm:$0xff] %v1065
    %1070 = vst [vmem:[#allocation4 + $0x8] sm:$0xff] %v1066
    %1071 = vst [vmem:[#allocation4 + $0x10] sm:$0xff] %v1067
    %1072 = vst [vmem:[#allocation4 + $0x18] sm:$0xff] %v1068
    // Predicated region
    $region78: #{tpu_custom_call.1} parent=1 // pred_check
      _
    $region79: #{tpu_custom_call.1} parent=1 // pred_check_branch
      %1074 = sbr.rel (0) target = $region81
    $region80: #{tpu_custom_call.1} parent=1 // pred_region
      %s1076 = ssub.s32 64, 64
      %1077 = vsyncadd [#allocation3], %s1076
      %s1079 = sshll.u32 [#allocation2], 4
      %s1080 = int_to_ptr.vmem [resolvable:$true] %s1079
      %1082 = dma.vmem_to_hbm [thread:$0]  %s1080, 64, %s19, [#allocation3]
    $region81: #{tpu_custom_call.1} parent=1 // pred_fallthru
      _
    // Predicated region
    $region82: #{tpu_custom_call.1} parent=1 // pred_check
      _
    $region83: #{tpu_custom_call.1} parent=1 // pred_check_branch
      %1084 = sbr.rel (0) target = $region85
    $region84: #{tpu_custom_call.1} parent=1 // pred_region
      %s1086 = ssub.s32 512, 512
      %1087 = vsyncadd [#allocation5], %s1086
      %s1088 = sshll.u32 [#allocation4], 4
      %s1089 = int_to_ptr.vmem [resolvable:$true] %s1088
      %1094 = dma.vmem_to_hbm [thread:$0]  %s1089, 512, %s20, [#allocation5], 128, 128, 8
    $region85: #{tpu_custom_call.1} parent=1 // pred_fallthru
      _
    // Predicated region
    $region86: #{tpu_custom_call.1} parent=1 // pred_check
      _
    $region87: #{tpu_custom_call.1} parent=1 // pred_check_branch
      %1096 = sbr.rel (0) target = $region89
    $region88: #{tpu_custom_call.1} parent=1 // pred_region
      %1097 = dma.done [#allocation3], 64
    $region89: #{tpu_custom_call.1} parent=1 // pred_fallthru
      _
    // Predicated region
    $region90: #{tpu_custom_call.1} parent=1 // pred_check
      _
    $region91: #{tpu_custom_call.1} parent=1 // pred_check_branch
      %1099 = sbr.rel (0) target = $region93
    $region92: #{tpu_custom_call.1} parent=1 // pred_region
      %1100 = dma.done [#allocation5], 512
    $region93: #{tpu_custom_call.1} parent=1 // pred_fallthru
      _
    %1101 = vsyncpa [#allocation3], 1
    %1102 = vsyncpa [#allocation5], 1

</llo_original>
